<compile_context>
chip_gen: v7x
topology: tpu7x:2x2x1
jax: 0.10.0
libtpu: 0.0.40
codegen_flags: <defaults>
</compile_context>

<pallas_src>
import functools

import jax
import jax.numpy as jnp
from jax import lax
from jax.experimental import pallas as pl
from jax.experimental.pallas import tpu as pltpu


_FULL_UNROLL_ROWS = 64  # fully unroll row loops up to this many output rows


# ---------------------------------------------------------------------------
# Generation-aware knobs (VMEM budget, accumulation dtype).
# ---------------------------------------------------------------------------
def _device_kind():
    try:
        return jax.devices()[0].device_kind.lower()
    except Exception:
        return ""


def _vmem_budgets():
    """Returns (per-step in+out tile budget, vmem_limit_bytes) per chip gen."""
    cap = None
    try:
        cap = int(pltpu.get_tpu_info().vmem_capacity_bytes)
    except Exception:
        cap = None
    if not cap or cap <= 0:
        # v7x has 64 MiB VMEM per TensorCore; v5e/v6e have 128 MiB.
        cap = 64 * 1024 * 1024 if "7" in _device_kind() else 128 * 1024 * 1024
    tile_budget = cap // 4  # x2 for double buffering -> at most cap/2 in flight
    vmem_limit = max(32 * 1024 * 1024,
                     min(int(cap * 0.75), cap - 16 * 1024 * 1024))
    return tile_budget, vmem_limit


def _acc_dtype(dtype):
    """max() is exact in any dtype; only v5e-and-older (no native bf16 VALU)
    upcast sub-32-bit floats to f32.  v6e / v7x reduce in the input dtype."""
    if jnp.issubdtype(dtype, jnp.floating) and jnp.dtype(dtype).itemsize < 4:
        kind = _device_kind()
        if not any(tag in kind for tag in ("v6", "v7", "7x")):
            return jnp.float32
    return dtype


def _row_loop(n_rows, body):
    """Loop over output rows: fully unrolled when short (static indices, full
    scheduler visibility); partially unrolled fori_loop otherwise so stores
    for row i overlap loads for row i+1."""
    if n_rows <= _FULL_UNROLL_ROWS:
        for i in range(n_rows):
            body(i, 0)
    else:
        lax.fori_loop(0, n_rows, body, 0, unroll=2)


def _largest_divisor_at_most(n, cap):
    cap = max(1, min(n, cap))
    for d in range(cap, 0, -1):
        if n % d == 0:
            return d
    return 1


# ---------------------------------------------------------------------------
# Path 1: lane-dense "planes" layout (C < 128 or C not a multiple of 128).
# Reads native NCHW (as (N*C, H, W)); zero padding applied inside the kernel.
# ---------------------------------------------------------------------------
def _maxpool_planes_kernel(x_ref, o_ref, *, k, p, H, W, Ho, Wo, acc_dtype):
    # x_ref: (r_blk, H, W) unpadded planes, W on lanes, H on sublanes.
    # o_ref: (r_blk, Ho, Wo)
    r_blk = x_ref.shape[0]
    mm_dtype = (jnp.float32 if jnp.issubdtype(jnp.dtype(acc_dtype), jnp.floating)
                else jnp.int32)

    # One-hot pick matrices: pick[dj][w, jo] = 1 iff w == 2*jo + dj - p.
    # colmax @ pick[dj] selects input column (2*jo + dj - p) for every output
    # column jo in one MXU matmul (no lane shuffles); out-of-range columns
    # select nothing and yield 0, which is exactly the zero-pad value.
    w_idx = lax.broadcasted_iota(jnp.int32, (W, Wo), 0)
    jo_idx = lax.broadcasted_iota(jnp.int32, (W, Wo), 1)
    pick = [(w_idx == (2 * jo_idx + dj - p)).astype(acc_dtype) for dj in range(k)]

    def row_body(ho, carry):
        static = isinstance(ho, int)
        # (1) Max over the k window rows (pure VPU); out-of-range rows
        #     contribute the zero-pad value.
        # TODO(synk): carry the (k-2) overlapping row maxima between
        # consecutive output rows to cut redundant loads/maxes.
        colmax = None
        for di in range(k):
            h = 2 * ho + di - p
            if static and not (0 <= h < H):
                term = jnp.zeros((r_blk, W), acc_dtype)
            else:
                hc = h if static else jnp.clip(h, 0, H - 1)
                row = x_ref[:, hc, :].astype(acc_dtype)
                if static:
                    term = row
                else:
                    inb = jnp.logical_and(h >= 0, h < H)
                    term = jnp.where(inb, row, jnp.zeros_like(row))
            colmax = term if colmax is None else jnp.maximum(colmax, term)
        # (2) Max over the k window columns fused with the stride-2
        #     decimation: k one-hot picks on the MXU.
        best = None
        for dj in range(k):
            picked = jnp.dot(colmax, pick[dj], preferred_element_type=mm_dtype)
            best = picked if best is None else jnp.maximum(best, picked)
        o_ref[:, ho, :] = best.astype(o_ref.dtype)
        return carry

    _row_loop(Ho, row_body)


def _maxpool_planes(x, k, p, tile_budget, vmem_limit):
    N, C, H, W = x.shape
    Hp, Wp = H + 2 * p, W + 2 * p
    Ho, Wo = (Hp - k) // 2 + 1, (Wp - k) // 2 + 1
    R = N * C
    acc_dtype = _acc_dtype(x.dtype)

    per_plane_bytes = (H * W + Ho * Wo) * x.dtype.itemsize
    r_cap = max(1, tile_budget // max(1, 2 * per_plane_bytes))
    if R >= 2:
        r_cap = min(r_cap, R // 2)  # >= 2 grid steps -> both v7x TensorCores busy
    r_blk = _largest_divisor_at_most(R, r_cap)
    # TODO(synk): H-blocking with a (k-2)-row input halo for planes whose
    # single-plane tile still exceeds the VMEM budget (r_blk == 1 overflow).

    kernel = functools.partial(_maxpool_planes_kernel, k=k, p=p, H=H, W=W,
                               Ho=Ho, Wo=Wo, acc_dtype=acc_dtype)
    out = pl.pallas_call(
        kernel,
        out_shape=jax.ShapeDtypeStruct((R, Ho, Wo), x.dtype),
        grid=(R // r_blk,),
        in_specs=[pl.BlockSpec((r_blk, H, W), lambda r: (r, 0, 0))],
        out_specs=pl.BlockSpec((r_blk, Ho, Wo), lambda r: (r, 0, 0)),
        compiler_params=pltpu.CompilerParams(
            dimension_semantics=("parallel",),
            vmem_limit_bytes=vmem_limit),
    )(x.reshape(R, H, W))
    return out.reshape(N, C, Ho, Wo)


# ---------------------------------------------------------------------------
# Path 2: channels-on-lanes layout (C >= 128 and C % 128 == 0).
# ---------------------------------------------------------------------------
def _maxpool_nhwc_kernel(x_ref, o_ref, *, k, Ho, Wo, acc_dtype):
    # x_ref: (Hp, Wp, c_blk) zero-padded tile, channels on lanes.
    # o_ref: (Ho, Wo, c_blk)
    cb = o_ref.shape[-1]
    w_span = 2 * (Wo - 1) + 1

    def row_body(ho, carry):
        h0 = 2 * ho
        # (1) elementwise max over the k window rows (VPU only).
        colmax = x_ref[h0, :, :].astype(acc_dtype)
        for di in range(1, k):
            colmax = jnp.maximum(colmax, x_ref[h0 + di, :, :].astype(acc_dtype))
        # (2) k stride-2 sublane slices for the W window; channels stay on lanes.
        row_max = lax.slice(colmax, (0, 0), (w_span, cb), (2, 1))
        for dj in range(1, k):
            row_max = jnp.maximum(
                row_max, lax.slice(colmax, (dj, 0), (dj + w_span, cb), (2, 1)))
        o_ref[ho, :, :] = row_max.astype(o_ref.dtype)
        return carry

    _row_loop(Ho, row_body)


def _pick_c_block(C, per_channel_bytes, tile_budget, want_split):
    cands = [cb for cb in range(128, C + 1, 128) if C % cb == 0]
    fitting = [cb for cb in cands if 2 * per_channel_bytes * cb <= tile_budget]
    if not fitting:
        return None
    if want_split:
        split = [cb for cb in fitting if cb < C]
        if split:
            return max(split)
    return max(fitting)


def _maxpool_channels_on_lanes(x, k, p, c_blk, vmem_limit):
    N, C, H, W = x.shape
    Hp, Wp = H + 2 * p, W + 2 * p
    Ho, Wo = (Hp - k) // 2 + 1, (Wp - k) // 2 + 1
    acc_dtype = _acc_dtype(x.dtype)

    # NCHW -> NHWC + zero pad: one layout pass putting channels on lanes.
    # TODO(synk): fold this producer into the pallas_call input DMA
    # (pltpu.CompilerParams(allow_input_fusion=...) / in-kernel halo masks)
    # and keep NHWC on the output when the consumer allows it, to remove the
    # extra HBM round trips flagged by the perf review.
    x_nhwc = jnp.pad(jnp.transpose(x, (0, 2, 3, 1)),
                     ((0, 0), (p, p), (p, p), (0, 0)))

    kernel = functools.partial(_maxpool_nhwc_kernel, k=k, Ho=Ho, Wo=Wo,
                               acc_dtype=acc_dtype)
    out_nhwc = pl.pallas_call(
        kernel,
        out_shape=jax.ShapeDtypeStruct((N, Ho, Wo, C), x.dtype),
        grid=(N, C // c_blk),
        in_specs=[pl.BlockSpec((None, Hp, Wp, c_blk), lambda n, c: (n, 0, 0, c))],
        out_specs=pl.BlockSpec((None, Ho, Wo, c_blk), lambda n, c: (n, 0, 0, c)),
        compiler_params=pltpu.CompilerParams(
            dimension_semantics=("parallel", "parallel"),
            vmem_limit_bytes=vmem_limit),
    )(x_nhwc)
    return jnp.transpose(out_nhwc, (0, 3, 1, 2))


# ---------------------------------------------------------------------------
# Router / public entry point.
# ---------------------------------------------------------------------------
def _maxpool2d(x, kernel_size):
    """Equivalent of maxpool(kernel_size).forward(x) for NCHW input x."""
    k = int(kernel_size)
    p = (k - 1) // 2                      # == int(np.floor((k - 1) / 2))
    N, C, H, W = x.shape
    Hp, Wp = H + 2 * p, W + 2 * p
    Ho, Wo = (Hp - k) // 2 + 1, (Wp - k) // 2 + 1
    if Ho < 1 or Wo < 1:
        raise ValueError(f"spatial dims {(H, W)} too small for kernel_size={k}")

    tile_budget, vmem_limit = _vmem_budgets()

    if C >= 128 and C % 128 == 0:
        # Channel-dense layout: 128-wide lane stores.
        per_channel_bytes = (Hp * Wp + Ho * Wo) * x.dtype.itemsize
        c_blk = _pick_c_block(C, per_channel_bytes, tile_budget,
                              want_split=(N == 1))
        if c_blk is not None:
            return _maxpool_channels_on_lanes(x, k, p, c_blk, vmem_limit)
    # Lane-dense plane layout: no HBM transpose / pad pre-pass.
    return _maxpool_planes(x, k, p, tile_budget, vmem_limit)


maxpool2d = jax.jit(_maxpool2d, static_argnums=(1,))


def _reference(x, kernel_size):
    # Pure-JAX reference matching PyTorch: zero-pad, then max_pool2d stride 2.
    p = (kernel_size - 1) // 2
    xf = x.astype(jnp.float32)
    xp = jnp.pad(xf, ((0, 0), (0, 0), (p, p), (p, p)))
    out = lax.reduce_window(
        xp, -jnp.inf, lax.max,
        window_dimensions=(1, 1, kernel_size, kernel_size),
        window_strides=(1, 1, 2, 2),
        padding="VALID")
    return out.astype(x.dtype)


if __name__ == "__main__":
    key = jax.random.PRNGKey(0)
    kernel_size = 3

    # Small shape (C < 128) -> lane-dense planes path (the ResNet-18 case).
    N, C, H, W = 2, 4, 16, 16
    x = jax.random.normal(key, (N, C, H, W), dtype=jnp.float32)
    out = jax.block_until_ready(maxpool2d(x, kernel_size))
    ref = _reference(x, kernel_size)
    assert out.shape == ref.shape, (out.shape, ref.shape)
    assert jnp.allclose(out, ref), "planes path mismatch vs reference (f32)"

    # bf16 path (exercises the generation-dependent accumulation dtype).
    xb = x.astype(jnp.bfloat16)
    outb = jax.block_until_ready(maxpool2d(xb, kernel_size))
    refb = _reference(xb, kernel_size)
    assert outb.dtype == jnp.bfloat16
    assert jnp.array_equal(outb, refb), "planes path mismatch vs reference (bf16)"

    # C multiple of 128 -> channels-on-lanes fallback path.
    xc = jax.random.normal(jax.random.PRNGKey(0), (1, 128, 8, 8),
                           dtype=jnp.float32)
    outc = jax.block_until_ready(maxpool2d(xc, kernel_size))
    refc = _reference(xc, kernel_size)
    assert outc.shape == refc.shape, (outc.shape, refc.shape)
    assert jnp.allclose(outc, refc), "channels-on-lanes path mismatch vs reference"

    print("KERNEL_OK")
</pallas_src>

<mosaic_0001>
module attributes {stable_mosaic.version = 11 : i64} {
  func.func @_maxpool_planes_kernel(%arg0: i32, %arg1: memref<4x16x16xf32, #tpu.memory_space<vmem>>, %arg2: memref<4x8x8xf32, #tpu.memory_space<vmem>>) attributes {dimension_semantics = [#tpu.dimension_semantics<parallel>], iteration_bounds = array<i64: 2>, scalar_prefetch = 0 : i64, scratch_operands = 0 : i64, tpu.core_type = #tpu.core_type<tc>, window_params = [{transform_indices = @transform_0, window_bounds = array<i64: 4, 16, 16>}, {transform_indices = @transform_1, window_bounds = array<i64: 4, 8, 8>}]} {
    %0 = tpu.iota {dimensions = array<i32: 0>} : vector<16x8xi32>
    %1 = tpu.iota {dimensions = array<i32: 1>} : vector<16x8xi32>
    %c2_i32 = arith.constant 2 : i32
    %2 = vector.broadcast %c2_i32 : i32 to vector<16x8xi32>
    %3 = arith.muli %2, %1 : vector<16x8xi32>
    %c0_i32 = arith.constant 0 : i32
    %4 = vector.broadcast %c0_i32 : i32 to vector<16x8xi32>
    %5 = arith.addi %3, %4 : vector<16x8xi32>
    %c1_i32 = arith.constant 1 : i32
    %6 = vector.broadcast %c1_i32 : i32 to vector<16x8xi32>
    %7 = arith.subi %5, %6 : vector<16x8xi32>
    %8 = arith.cmpi eq, %0, %7 : vector<16x8xi32>
    %9 = arith.extui %8 : vector<16x8xi1> to vector<16x8xi32>
    %10 = arith.sitofp %9 : vector<16x8xi32> to vector<16x8xf32>
    %c2_i32_0 = arith.constant 2 : i32
    %11 = vector.broadcast %c2_i32_0 : i32 to vector<16x8xi32>
    %12 = arith.muli %11, %1 : vector<16x8xi32>
    %c1_i32_1 = arith.constant 1 : i32
    %13 = vector.broadcast %c1_i32_1 : i32 to vector<16x8xi32>
    %14 = arith.addi %12, %13 : vector<16x8xi32>
    %c1_i32_2 = arith.constant 1 : i32
    %15 = vector.broadcast %c1_i32_2 : i32 to vector<16x8xi32>
    %16 = arith.subi %14, %15 : vector<16x8xi32>
    %17 = arith.cmpi eq, %0, %16 : vector<16x8xi32>
    %18 = arith.extui %17 : vector<16x8xi1> to vector<16x8xi32>
    %19 = arith.sitofp %18 : vector<16x8xi32> to vector<16x8xf32>
    %c2_i32_3 = arith.constant 2 : i32
    %20 = vector.broadcast %c2_i32_3 : i32 to vector<16x8xi32>
    %21 = arith.muli %20, %1 : vector<16x8xi32>
    %c2_i32_4 = arith.constant 2 : i32
    %22 = vector.broadcast %c2_i32_4 : i32 to vector<16x8xi32>
    %23 = arith.addi %21, %22 : vector<16x8xi32>
    %c1_i32_5 = arith.constant 1 : i32
    %24 = vector.broadcast %c1_i32_5 : i32 to vector<16x8xi32>
    %25 = arith.subi %23, %24 : vector<16x8xi32>
    %26 = arith.cmpi eq, %0, %25 : vector<16x8xi32>
    %27 = arith.extui %26 : vector<16x8xi1> to vector<16x8xi32>
    %28 = arith.sitofp %27 : vector<16x8xi32> to vector<16x8xf32>
    %cst = arith.constant 0.000000e+00 : f32
    %29 = vector.broadcast %cst : f32 to vector<4x16xf32>
    %c0 = arith.constant 0 : index
    %c0_6 = arith.constant 0 : index
    %c0_7 = arith.constant 0 : index
    %30 = vector.load %arg1[%c0, %c0_6, %c0_7] : memref<4x16x16xf32, #tpu.memory_space<vmem>>, vector<4x1x16xf32>
    %31 = vector.shape_cast %30 : vector<4x1x16xf32> to vector<4x16xf32>
    %32 = arith.maximumf %29, %31 : vector<4x16xf32>
    %c0_8 = arith.constant 0 : index
    %c1 = arith.constant 1 : index
    %c0_9 = arith.constant 0 : index
    %33 = vector.load %arg1[%c0_8, %c1, %c0_9] : memref<4x16x16xf32, #tpu.memory_space<vmem>>, vector<4x1x16xf32>
    %34 = vector.shape_cast %33 : vector<4x1x16xf32> to vector<4x16xf32>
    %35 = arith.maximumf %32, %34 : vector<4x16xf32>
    %cst_10 = arith.constant dense<0.000000e+00> : vector<4x8xf32>
    %36 = tpu.matmul %35, %10, %cst_10 {dimension_numbers = #tpu.dot_dimension_numbers<[1], [0], [0], [1], [0, 0, 1, 1], [], []>} : vector<4x16xf32>, vector<16x8xf32>, vector<4x8xf32> -> vector<4x8xf32>
    %cst_11 = arith.constant dense<0.000000e+00> : vector<4x8xf32>
    %37 = tpu.matmul %35, %19, %cst_11 {dimension_numbers = #tpu.dot_dimension_numbers<[1], [0], [0], [1], [0, 0, 1, 1], [], []>} : vector<4x16xf32>, vector<16x8xf32>, vector<4x8xf32> -> vector<4x8xf32>
    %38 = arith.maximumf %36, %37 : vector<4x8xf32>
    %cst_12 = arith.constant dense<0.000000e+00> : vector<4x8xf32>
    %39 = tpu.matmul %35, %28, %cst_12 {dimension_numbers = #tpu.dot_dimension_numbers<[1], [0], [0], [1], [0, 0, 1, 1], [], []>} : vector<4x16xf32>, vector<16x8xf32>, vector<4x8xf32> -> vector<4x8xf32>
    %40 = arith.maximumf %38, %39 : vector<4x8xf32>
    %c0_13 = arith.constant 0 : index
    %c0_14 = arith.constant 0 : index
    %c0_15 = arith.constant 0 : index
    %41 = vector.load %arg2[%c0_13, %c0_14, %c0_15] : memref<4x8x8xf32, #tpu.memory_space<vmem>>, vector<4x1x8xf32>
    %42 = vector.shape_cast %41 : vector<4x1x8xf32> to vector<4x8xf32>
    %43 = vector.shape_cast %40 : vector<4x8xf32> to vector<4x1x8xf32>
    tpu.vector_store %arg2[%c0_13, %c0_14, %c0_15], %43 {strides = array<i32>} : memref<4x8x8xf32, #tpu.memory_space<vmem>>, vector<4x1x8xf32>,
    %c0_16 = arith.constant 0 : index
    %c1_17 = arith.constant 1 : index
    %c0_18 = arith.constant 0 : index
    %44 = vector.load %arg1[%c0_16, %c1_17, %c0_18] : memref<4x16x16xf32, #tpu.memory_space<vmem>>, vector<4x1x16xf32>
    %45 = vector.shape_cast %44 : vector<4x1x16xf32> to vector<4x16xf32>
    %c0_19 = arith.constant 0 : index
    %c2 = arith.constant 2 : index
    %c0_20 = arith.constant 0 : index
    %46 = vector.load %arg1[%c0_19, %c2, %c0_20] : memref<4x16x16xf32, #tpu.memory_space<vmem>>, vector<4x1x16xf32>
    %47 = vector.shape_cast %46 : vector<4x1x16xf32> to vector<4x16xf32>
    %48 = arith.maximumf %45, %47 : vector<4x16xf32>
    %c0_21 = arith.constant 0 : index
    %c3 = arith.constant 3 : index
    %c0_22 = arith.constant 0 : index
    %49 = vector.load %arg1[%c0_21, %c3, %c0_22] : memref<4x16x16xf32, #tpu.memory_space<vmem>>, vector<4x1x16xf32>
    %50 = vector.shape_cast %49 : vector<4x1x16xf32> to vector<4x16xf32>
    %51 = arith.maximumf %48, %50 : vector<4x16xf32>
    %cst_23 = arith.constant dense<0.000000e+00> : vector<4x8xf32>
    %52 = tpu.matmul %51, %10, %cst_23 {dimension_numbers = #tpu.dot_dimension_numbers<[1], [0], [0], [1], [0, 0, 1, 1], [], []>} : vector<4x16xf32>, vector<16x8xf32>, vector<4x8xf32> -> vector<4x8xf32>
    %cst_24 = arith.constant dense<0.000000e+00> : vector<4x8xf32>
    %53 = tpu.matmul %51, %19, %cst_24 {dimension_numbers = #tpu.dot_dimension_numbers<[1], [0], [0], [1], [0, 0, 1, 1], [], []>} : vector<4x16xf32>, vector<16x8xf32>, vector<4x8xf32> -> vector<4x8xf32>
    %54 = arith.maximumf %52, %53 : vector<4x8xf32>
    %cst_25 = arith.constant dense<0.000000e+00> : vector<4x8xf32>
    %55 = tpu.matmul %51, %28, %cst_25 {dimension_numbers = #tpu.dot_dimension_numbers<[1], [0], [0], [1], [0, 0, 1, 1], [], []>} : vector<4x16xf32>, vector<16x8xf32>, vector<4x8xf32> -> vector<4x8xf32>
    %56 = arith.maximumf %54, %55 : vector<4x8xf32>
    %c0_26 = arith.constant 0 : index
    %c1_27 = arith.constant 1 : index
    %c0_28 = arith.constant 0 : index
    %57 = vector.load %arg2[%c0_26, %c1_27, %c0_28] : memref<4x8x8xf32, #tpu.memory_space<vmem>>, vector<4x1x8xf32>
    %58 = vector.shape_cast %57 : vector<4x1x8xf32> to vector<4x8xf32>
    %59 = vector.shape_cast %56 : vector<4x8xf32> to vector<4x1x8xf32>
    tpu.vector_store %arg2[%c0_26, %c1_27, %c0_28], %59 {strides = array<i32>} : memref<4x8x8xf32, #tpu.memory_space<vmem>>, vector<4x1x8xf32>,
    %c0_29 = arith.constant 0 : index
    %c3_30 = arith.constant 3 : index
    %c0_31 = arith.constant 0 : index
    %60 = vector.load %arg1[%c0_29, %c3_30, %c0_31] : memref<4x16x16xf32, #tpu.memory_space<vmem>>, vector<4x1x16xf32>
    %61 = vector.shape_cast %60 : vector<4x1x16xf32> to vector<4x16xf32>
    %c0_32 = arith.constant 0 : index
    %c4 = arith.constant 4 : index
    %c0_33 = arith.constant 0 : index
    %62 = vector.load %arg1[%c0_32, %c4, %c0_33] : memref<4x16x16xf32, #tpu.memory_space<vmem>>, vector<4x1x16xf32>
    %63 = vector.shape_cast %62 : vector<4x1x16xf32> to vector<4x16xf32>
    %64 = arith.maximumf %61, %63 : vector<4x16xf32>
    %c0_34 = arith.constant 0 : index
    %c5 = arith.constant 5 : index
    %c0_35 = arith.constant 0 : index
    %65 = vector.load %arg1[%c0_34, %c5, %c0_35] : memref<4x16x16xf32, #tpu.memory_space<vmem>>, vector<4x1x16xf32>
    %66 = vector.shape_cast %65 : vector<4x1x16xf32> to vector<4x16xf32>
    %67 = arith.maximumf %64, %66 : vector<4x16xf32>
    %cst_36 = arith.constant dense<0.000000e+00> : vector<4x8xf32>
    %68 = tpu.matmul %67, %10, %cst_36 {dimension_numbers = #tpu.dot_dimension_numbers<[1], [0], [0], [1], [0, 0, 1, 1], [], []>} : vector<4x16xf32>, vector<16x8xf32>, vector<4x8xf32> -> vector<4x8xf32>
    %cst_37 = arith.constant dense<0.000000e+00> : vector<4x8xf32>
    %69 = tpu.matmul %67, %19, %cst_37 {dimension_numbers = #tpu.dot_dimension_numbers<[1], [0], [0], [1], [0, 0, 1, 1], [], []>} : vector<4x16xf32>, vector<16x8xf32>, vector<4x8xf32> -> vector<4x8xf32>
    %70 = arith.maximumf %68, %69 : vector<4x8xf32>
    %cst_38 = arith.constant dense<0.000000e+00> : vector<4x8xf32>
    %71 = tpu.matmul %67, %28, %cst_38 {dimension_numbers = #tpu.dot_dimension_numbers<[1], [0], [0], [1], [0, 0, 1, 1], [], []>} : vector<4x16xf32>, vector<16x8xf32>, vector<4x8xf32> -> vector<4x8xf32>
    %72 = arith.maximumf %70, %71 : vector<4x8xf32>
    %c0_39 = arith.constant 0 : index
    %c2_40 = arith.constant 2 : index
    %c0_41 = arith.constant 0 : index
    %73 = vector.load %arg2[%c0_39, %c2_40, %c0_41] : memref<4x8x8xf32, #tpu.memory_space<vmem>>, vector<4x1x8xf32>
    %74 = vector.shape_cast %73 : vector<4x1x8xf32> to vector<4x8xf32>
    %75 = vector.shape_cast %72 : vector<4x8xf32> to vector<4x1x8xf32>
    tpu.vector_store %arg2[%c0_39, %c2_40, %c0_41], %75 {strides = array<i32>} : memref<4x8x8xf32, #tpu.memory_space<vmem>>, vector<4x1x8xf32>,
    %c0_42 = arith.constant 0 : index
    %c5_43 = arith.constant 5 : index
    %c0_44 = arith.constant 0 : index
    %76 = vector.load %arg1[%c0_42, %c5_43, %c0_44] : memref<4x16x16xf32, #tpu.memory_space<vmem>>, vector<4x1x16xf32>
    %77 = vector.shape_cast %76 : vector<4x1x16xf32> to vector<4x16xf32>
    %c0_45 = arith.constant 0 : index
    %c6 = arith.constant 6 : index
    %c0_46 = arith.constant 0 : index
    %78 = vector.load %arg1[%c0_45, %c6, %c0_46] : memref<4x16x16xf32, #tpu.memory_space<vmem>>, vector<4x1x16xf32>
    %79 = vector.shape_cast %78 : vector<4x1x16xf32> to vector<4x16xf32>
    %80 = arith.maximumf %77, %79 : vector<4x16xf32>
    %c0_47 = arith.constant 0 : index
    %c7 = arith.constant 7 : index
    %c0_48 = arith.constant 0 : index
    %81 = vector.load %arg1[%c0_47, %c7, %c0_48] : memref<4x16x16xf32, #tpu.memory_space<vmem>>, vector<4x1x16xf32>
    %82 = vector.shape_cast %81 : vector<4x1x16xf32> to vector<4x16xf32>
    %83 = arith.maximumf %80, %82 : vector<4x16xf32>
    %cst_49 = arith.constant dense<0.000000e+00> : vector<4x8xf32>
    %84 = tpu.matmul %83, %10, %cst_49 {dimension_numbers = #tpu.dot_dimension_numbers<[1], [0], [0], [1], [0, 0, 1, 1], [], []>} : vector<4x16xf32>, vector<16x8xf32>, vector<4x8xf32> -> vector<4x8xf32>
    %cst_50 = arith.constant dense<0.000000e+00> : vector<4x8xf32>
    %85 = tpu.matmul %83, %19, %cst_50 {dimension_numbers = #tpu.dot_dimension_numbers<[1], [0], [0], [1], [0, 0, 1, 1], [], []>} : vector<4x16xf32>, vector<16x8xf32>, vector<4x8xf32> -> vector<4x8xf32>
    %86 = arith.maximumf %84, %85 : vector<4x8xf32>
    %cst_51 = arith.constant dense<0.000000e+00> : vector<4x8xf32>
    %87 = tpu.matmul %83, %28, %cst_51 {dimension_numbers = #tpu.dot_dimension_numbers<[1], [0], [0], [1], [0, 0, 1, 1], [], []>} : vector<4x16xf32>, vector<16x8xf32>, vector<4x8xf32> -> vector<4x8xf32>
    %88 = arith.maximumf %86, %87 : vector<4x8xf32>
    %c0_52 = arith.constant 0 : index
    %c3_53 = arith.constant 3 : index
    %c0_54 = arith.constant 0 : index
    %89 = vector.load %arg2[%c0_52, %c3_53, %c0_54] : memref<4x8x8xf32, #tpu.memory_space<vmem>>, vector<4x1x8xf32>
    %90 = vector.shape_cast %89 : vector<4x1x8xf32> to vector<4x8xf32>
    %91 = vector.shape_cast %88 : vector<4x8xf32> to vector<4x1x8xf32>
    tpu.vector_store %arg2[%c0_52, %c3_53, %c0_54], %91 {strides = array<i32>} : memref<4x8x8xf32, #tpu.memory_space<vmem>>, vector<4x1x8xf32>,
    %c0_55 = arith.constant 0 : index
    %c7_56 = arith.constant 7 : index
    %c0_57 = arith.constant 0 : index
    %92 = vector.load %arg1[%c0_55, %c7_56, %c0_57] : memref<4x16x16xf32, #tpu.memory_space<vmem>>, vector<4x1x16xf32>
    %93 = vector.shape_cast %92 : vector<4x1x16xf32> to vector<4x16xf32>
    %c0_58 = arith.constant 0 : index
    %c8 = arith.constant 8 : index
    %c0_59 = arith.constant 0 : index
    %94 = vector.load %arg1[%c0_58, %c8, %c0_59] : memref<4x16x16xf32, #tpu.memory_space<vmem>>, vector<4x1x16xf32>
    %95 = vector.shape_cast %94 : vector<4x1x16xf32> to vector<4x16xf32>
    %96 = arith.maximumf %93, %95 : vector<4x16xf32>
    %c0_60 = arith.constant 0 : index
    %c9 = arith.constant 9 : index
    %c0_61 = arith.constant 0 : index
    %97 = vector.load %arg1[%c0_60, %c9, %c0_61] : memref<4x16x16xf32, #tpu.memory_space<vmem>>, vector<4x1x16xf32>
    %98 = vector.shape_cast %97 : vector<4x1x16xf32> to vector<4x16xf32>
    %99 = arith.maximumf %96, %98 : vector<4x16xf32>
    %cst_62 = arith.constant dense<0.000000e+00> : vector<4x8xf32>
    %100 = tpu.matmul %99, %10, %cst_62 {dimension_numbers = #tpu.dot_dimension_numbers<[1], [0], [0], [1], [0, 0, 1, 1], [], []>} : vector<4x16xf32>, vector<16x8xf32>, vector<4x8xf32> -> vector<4x8xf32>
    %cst_63 = arith.constant dense<0.000000e+00> : vector<4x8xf32>
    %101 = tpu.matmul %99, %19, %cst_63 {dimension_numbers = #tpu.dot_dimension_numbers<[1], [0], [0], [1], [0, 0, 1, 1], [], []>} : vector<4x16xf32>, vector<16x8xf32>, vector<4x8xf32> -> vector<4x8xf32>
    %102 = arith.maximumf %100, %101 : vector<4x8xf32>
    %cst_64 = arith.constant dense<0.000000e+00> : vector<4x8xf32>
    %103 = tpu.matmul %99, %28, %cst_64 {dimension_numbers = #tpu.dot_dimension_numbers<[1], [0], [0], [1], [0, 0, 1, 1], [], []>} : vector<4x16xf32>, vector<16x8xf32>, vector<4x8xf32> -> vector<4x8xf32>
    %104 = arith.maximumf %102, %103 : vector<4x8xf32>
    %c0_65 = arith.constant 0 : index
    %c4_66 = arith.constant 4 : index
    %c0_67 = arith.constant 0 : index
    %105 = vector.load %arg2[%c0_65, %c4_66, %c0_67] : memref<4x8x8xf32, #tpu.memory_space<vmem>>, vector<4x1x8xf32>
    %106 = vector.shape_cast %105 : vector<4x1x8xf32> to vector<4x8xf32>
    %107 = vector.shape_cast %104 : vector<4x8xf32> to vector<4x1x8xf32>
    tpu.vector_store %arg2[%c0_65, %c4_66, %c0_67], %107 {strides = array<i32>} : memref<4x8x8xf32, #tpu.memory_space<vmem>>, vector<4x1x8xf32>,
    %c0_68 = arith.constant 0 : index
    %c9_69 = arith.constant 9 : index
    %c0_70 = arith.constant 0 : index
    %108 = vector.load %arg1[%c0_68, %c9_69, %c0_70] : memref<4x16x16xf32, #tpu.memory_space<vmem>>, vector<4x1x16xf32>
    %109 = vector.shape_cast %108 : vector<4x1x16xf32> to vector<4x16xf32>
    %c0_71 = arith.constant 0 : index
    %c10 = arith.constant 10 : index
    %c0_72 = arith.constant 0 : index
    %110 = vector.load %arg1[%c0_71, %c10, %c0_72] : memref<4x16x16xf32, #tpu.memory_space<vmem>>, vector<4x1x16xf32>
    %111 = vector.shape_cast %110 : vector<4x1x16xf32> to vector<4x16xf32>
    %112 = arith.maximumf %109, %111 : vector<4x16xf32>
    %c0_73 = arith.constant 0 : index
    %c11 = arith.constant 11 : index
    %c0_74 = arith.constant 0 : index
    %113 = vector.load %arg1[%c0_73, %c11, %c0_74] : memref<4x16x16xf32, #tpu.memory_space<vmem>>, vector<4x1x16xf32>
    %114 = vector.shape_cast %113 : vector<4x1x16xf32> to vector<4x16xf32>
    %115 = arith.maximumf %112, %114 : vector<4x16xf32>
    %cst_75 = arith.constant dense<0.000000e+00> : vector<4x8xf32>
    %116 = tpu.matmul %115, %10, %cst_75 {dimension_numbers = #tpu.dot_dimension_numbers<[1], [0], [0], [1], [0, 0, 1, 1], [], []>} : vector<4x16xf32>, vector<16x8xf32>, vector<4x8xf32> -> vector<4x8xf32>
    %cst_76 = arith.constant dense<0.000000e+00> : vector<4x8xf32>
    %117 = tpu.matmul %115, %19, %cst_76 {dimension_numbers = #tpu.dot_dimension_numbers<[1], [0], [0], [1], [0, 0, 1, 1], [], []>} : vector<4x16xf32>, vector<16x8xf32>, vector<4x8xf32> -> vector<4x8xf32>
    %118 = arith.maximumf %116, %117 : vector<4x8xf32>
    %cst_77 = arith.constant dense<0.000000e+00> : vector<4x8xf32>
    %119 = tpu.matmul %115, %28, %cst_77 {dimension_numbers = #tpu.dot_dimension_numbers<[1], [0], [0], [1], [0, 0, 1, 1], [], []>} : vector<4x16xf32>, vector<16x8xf32>, vector<4x8xf32> -> vector<4x8xf32>
    %120 = arith.maximumf %118, %119 : vector<4x8xf32>
    %c0_78 = arith.constant 0 : index
    %c5_79 = arith.constant 5 : index
    %c0_80 = arith.constant 0 : index
    %121 = vector.load %arg2[%c0_78, %c5_79, %c0_80] : memref<4x8x8xf32, #tpu.memory_space<vmem>>, vector<4x1x8xf32>
    %122 = vector.shape_cast %121 : vector<4x1x8xf32> to vector<4x8xf32>
    %123 = vector.shape_cast %120 : vector<4x8xf32> to vector<4x1x8xf32>
    tpu.vector_store %arg2[%c0_78, %c5_79, %c0_80], %123 {strides = array<i32>} : memref<4x8x8xf32, #tpu.memory_space<vmem>>, vector<4x1x8xf32>,
    %c0_81 = arith.constant 0 : index
    %c11_82 = arith.constant 11 : index
    %c0_83 = arith.constant 0 : index
    %124 = vector.load %arg1[%c0_81, %c11_82, %c0_83] : memref<4x16x16xf32, #tpu.memory_space<vmem>>, vector<4x1x16xf32>
    %125 = vector.shape_cast %124 : vector<4x1x16xf32> to vector<4x16xf32>
    %c0_84 = arith.constant 0 : index
    %c12 = arith.constant 12 : index
    %c0_85 = arith.constant 0 : index
    %126 = vector.load %arg1[%c0_84, %c12, %c0_85] : memref<4x16x16xf32, #tpu.memory_space<vmem>>, vector<4x1x16xf32>
    %127 = vector.shape_cast %126 : vector<4x1x16xf32> to vector<4x16xf32>
    %128 = arith.maximumf %125, %127 : vector<4x16xf32>
    %c0_86 = arith.constant 0 : index
    %c13 = arith.constant 13 : index
    %c0_87 = arith.constant 0 : index
    %129 = vector.load %arg1[%c0_86, %c13, %c0_87] : memref<4x16x16xf32, #tpu.memory_space<vmem>>, vector<4x1x16xf32>
    %130 = vector.shape_cast %129 : vector<4x1x16xf32> to vector<4x16xf32>
    %131 = arith.maximumf %128, %130 : vector<4x16xf32>
    %cst_88 = arith.constant dense<0.000000e+00> : vector<4x8xf32>
    %132 = tpu.matmul %131, %10, %cst_88 {dimension_numbers = #tpu.dot_dimension_numbers<[1], [0], [0], [1], [0, 0, 1, 1], [], []>} : vector<4x16xf32>, vector<16x8xf32>, vector<4x8xf32> -> vector<4x8xf32>
    %cst_89 = arith.constant dense<0.000000e+00> : vector<4x8xf32>
    %133 = tpu.matmul %131, %19, %cst_89 {dimension_numbers = #tpu.dot_dimension_numbers<[1], [0], [0], [1], [0, 0, 1, 1], [], []>} : vector<4x16xf32>, vector<16x8xf32>, vector<4x8xf32> -> vector<4x8xf32>
    %134 = arith.maximumf %132, %133 : vector<4x8xf32>
    %cst_90 = arith.constant dense<0.000000e+00> : vector<4x8xf32>
    %135 = tpu.matmul %131, %28, %cst_90 {dimension_numbers = #tpu.dot_dimension_numbers<[1], [0], [0], [1], [0, 0, 1, 1], [], []>} : vector<4x16xf32>, vector<16x8xf32>, vector<4x8xf32> -> vector<4x8xf32>
    %136 = arith.maximumf %134, %135 : vector<4x8xf32>
    %c0_91 = arith.constant 0 : index
    %c6_92 = arith.constant 6 : index
    %c0_93 = arith.constant 0 : index
    %137 = vector.load %arg2[%c0_91, %c6_92, %c0_93] : memref<4x8x8xf32, #tpu.memory_space<vmem>>, vector<4x1x8xf32>
    %138 = vector.shape_cast %137 : vector<4x1x8xf32> to vector<4x8xf32>
    %139 = vector.shape_cast %136 : vector<4x8xf32> to vector<4x1x8xf32>
    tpu.vector_store %arg2[%c0_91, %c6_92, %c0_93], %139 {strides = array<i32>} : memref<4x8x8xf32, #tpu.memory_space<vmem>>, vector<4x1x8xf32>,
    %c0_94 = arith.constant 0 : index
    %c13_95 = arith.constant 13 : index
    %c0_96 = arith.constant 0 : index
    %140 = vector.load %arg1[%c0_94, %c13_95, %c0_96] : memref<4x16x16xf32, #tpu.memory_space<vmem>>, vector<4x1x16xf32>
    %141 = vector.shape_cast %140 : vector<4x1x16xf32> to vector<4x16xf32>
    %c0_97 = arith.constant 0 : index
    %c14 = arith.constant 14 : index
    %c0_98 = arith.constant 0 : index
    %142 = vector.load %arg1[%c0_97, %c14, %c0_98] : memref<4x16x16xf32, #tpu.memory_space<vmem>>, vector<4x1x16xf32>
    %143 = vector.shape_cast %142 : vector<4x1x16xf32> to vector<4x16xf32>
    %144 = arith.maximumf %141, %143 : vector<4x16xf32>
    %c0_99 = arith.constant 0 : index
    %c15 = arith.constant 15 : index
    %c0_100 = arith.constant 0 : index
    %145 = vector.load %arg1[%c0_99, %c15, %c0_100] : memref<4x16x16xf32, #tpu.memory_space<vmem>>, vector<4x1x16xf32>
    %146 = vector.shape_cast %145 : vector<4x1x16xf32> to vector<4x16xf32>
    %147 = arith.maximumf %144, %146 : vector<4x16xf32>
    %cst_101 = arith.constant dense<0.000000e+00> : vector<4x8xf32>
    %148 = tpu.matmul %147, %10, %cst_101 {dimension_numbers = #tpu.dot_dimension_numbers<[1], [0], [0], [1], [0, 0, 1, 1], [], []>} : vector<4x16xf32>, vector<16x8xf32>, vector<4x8xf32> -> vector<4x8xf32>
    %cst_102 = arith.constant dense<0.000000e+00> : vector<4x8xf32>
    %149 = tpu.matmul %147, %19, %cst_102 {dimension_numbers = #tpu.dot_dimension_numbers<[1], [0], [0], [1], [0, 0, 1, 1], [], []>} : vector<4x16xf32>, vector<16x8xf32>, vector<4x8xf32> -> vector<4x8xf32>
    %150 = arith.maximumf %148, %149 : vector<4x8xf32>
    %cst_103 = arith.constant dense<0.000000e+00> : vector<4x8xf32>
    %151 = tpu.matmul %147, %28, %cst_103 {dimension_numbers = #tpu.dot_dimension_numbers<[1], [0], [0], [1], [0, 0, 1, 1], [], []>} : vector<4x16xf32>, vector<16x8xf32>, vector<4x8xf32> -> vector<4x8xf32>
    %152 = arith.maximumf %150, %151 : vector<4x8xf32>
    %c0_104 = arith.constant 0 : index
    %c7_105 = arith.constant 7 : index
    %c0_106 = arith.constant 0 : index
    %153 = vector.load %arg2[%c0_104, %c7_105, %c0_106] : memref<4x8x8xf32, #tpu.memory_space<vmem>>, vector<4x1x8xf32>
    %154 = vector.shape_cast %153 : vector<4x1x8xf32> to vector<4x8xf32>
    %155 = vector.shape_cast %152 : vector<4x8xf32> to vector<4x1x8xf32>
    tpu.vector_store %arg2[%c0_104, %c7_105, %c0_106], %155 {strides = array<i32>} : memref<4x8x8xf32, #tpu.memory_space<vmem>>, vector<4x1x8xf32>,
    return
  }
  func.func @transform_0(%arg0: i32) -> (i32, i32, i32) {
    %c0_i32 = arith.constant 0 : i32
    %c0_i32_0 = arith.constant 0 : i32
    %c0_i32_1 = arith.constant 0 : i32
    return %arg0, %c0_i32, %c0_i32_0 : i32, i32, i32
  }
  func.func @transform_1(%arg0: i32) -> (i32, i32, i32) {
    %c0_i32 = arith.constant 0 : i32
    %c0_i32_0 = arith.constant 0 : i32
    %c0_i32_1 = arith.constant 0 : i32
    return %arg0, %c0_i32, %c0_i32_0 : i32, i32, i32
  }
}

</mosaic_0001>

<llo_original>
// kernel: _maxpool2d.1
$region0: #{_maxpool2d.1}
  #allocation0 [shape = 'u32[]', space=smem, size = 0x4, offset = 0x4, fixed_abs, tag = 'smem constant byte address 0x4 - core index']
  #allocation1 [shape = 'u32[144,128]{1,0:T(1,128)}', space=vmem, size = 0x12000, scoped, tag = 'internal scratch']
  %s0 = inlined_call_operand.hbm [shape: f32[8,16,16], index: 0, kind: input, shape index: {}]
  %s1 = inlined_call_operand.hbm [shape: f32[8,8,8], index: 1, kind: output, shape index: {}]
  %s2 = sld [smem:[#allocation0]]
  $region41: #{_maxpool2d.1} parent=0
    _
  %s4 = ssub.s32 1, %s2
  %s5 = scalar_select 0, %s4, %s2
  $region1: #{_maxpool2d.1} parent=0
    #allocation2 [shape = 'u8[65536]{0}', space=vmem, size = 0x10000, scoped, tag = 'input window, operand 0']
    #allocation3 [shape = 's32[2]{0}', space=sflag, size = 0x8, scoped, tag = 'scoped memory for _maxpool2d.1']
    #allocation4 [shape = 's32[2]{0}', space=sflag, size = 0x8, scoped, tag = 'scoped memory for _maxpool2d.1']
    #allocation5 [shape = 'u8[32768]{0}', space=vmem, size = 0x8000, scoped, tag = 'output window, operand 0']
    %6 = vsyncpa [#allocation3], 0
    %s7 = scalar_lea.sflag [#allocation3], 1
    %8 = vsyncpa %s7, 0
    %9 = vsyncpa [#allocation4], 0
    %s10 = scalar_lea.sflag [#allocation4], 1
    %11 = vsyncpa %s10, 0
    loop: start=0, step=1, limit=4
    $region2: #{_maxpool2d.1} parent=1 // loop_pre_header
      _
    $region3: #{_maxpool2d.1} parent=1 // loop_header
      %s13 = sphi 0, %s17
      %p14 = scmp.ge.s32.totalorder %s13, 4
      %s23 = sphi 0, %s25
      %s26 = sphi 0, %s23
      %s27 = sphi 0, %s26
      %s43 = sphi 0, %s27
      %s49 = sphi 0, %s51
      %s52 = sphi 0, %s49
      %s53 = sphi 0, %s52
      %s69 = sphi 0, %s53
    $region4: #{_maxpool2d.1} parent=1 // loop_header_branch
      %16 = sbr.rel (%p14) target = $region8
    $region5: #{_maxpool2d.1} parent=1 // loop_body
      %s18 = ssub.s32 %s13, 1
      %s19 = ssub.s32 %s13, 2
      %s20 = sadd.s32 %s13, 1
      %s21 = ssub.s32 %s13, %s20
      %p22 = scmp.eq.s32.totalorder %s21, 0
      %s24 = sadd.s32 %s23, 1
      %s25 = scalar_select %p22, %s23, %s24
      %p28 = pneg %p22
      %p29 = scmp.eq.s32.totalorder %s13, 1
      %p30 = por %p28, %p29
      %p31 = scmp.ne.s32.totalorder %s23, %s26
      %p32 = scmp.eq.s32.totalorder %s13, 0
      %p33 = por %p31, %p32
      %p34 = scmp.ne.s32.totalorder %s23, %s26
      %p35 = scmp.eq.s32.totalorder %s18, 1
      %p36 = por %p34, %p35
      %p37 = scmp.ne.s32.totalorder %s26, %s27
      %p38 = scmp.eq.s32.totalorder %s18, 0
      %p39 = por %p37, %p38
      %p40 = scmp.ne.s32.totalorder %s26, %s27
      %p41 = scmp.eq.s32.totalorder %s19, 1
      %p42 = por %p40, %p41
      %p44 = scmp.ne.s32.totalorder %s27, %s43
      %p45 = scmp.eq.s32.totalorder %s19, 0
      %p46 = por %p44, %p45
      %s47 = ssub.s32 %s13, %s20
      %p48 = scmp.eq.s32.totalorder %s47, 0
      %s50 = sadd.s32 %s49, 1
      %s51 = scalar_select %p48, %s49, %s50
      %p54 = pneg %p48
      %p55 = scmp.eq.s32.totalorder %s13, 1
      %p56 = por %p54, %p55
      %p57 = scmp.ne.s32.totalorder %s49, %s52
      %p58 = scmp.eq.s32.totalorder %s13, 0
      %p59 = por %p57, %p58
      %p60 = scmp.ne.s32.totalorder %s49, %s52
      %p61 = scmp.eq.s32.totalorder %s18, 1
      %p62 = por %p60, %p61
      %p63 = scmp.ne.s32.totalorder %s52, %s53
      %p64 = scmp.eq.s32.totalorder %s18, 0
      %p65 = por %p63, %p64
      %p66 = scmp.ne.s32.totalorder %s52, %s53
      %p67 = scmp.eq.s32.totalorder %s19, 1
      %p68 = por %p66, %p67
      %p70 = scmp.ne.s32.totalorder %s53, %s69
      %p71 = scmp.eq.s32.totalorder %s19, 0
      %p72 = por %p70, %p71
      %p73 = scmp.le.s32.totalorder 1, %s13
      %p74 = scmp.lt.s32.totalorder %s13, 3
      %p75 = pnand %p73, %p74
      %p76 = pneg %p75
      // Predicated region
      $region9: #{_maxpool2d.1} parent=5 // pred_check
        _
      $region10: #{_maxpool2d.1} parent=5 // pred_check_branch
        %78 = sbr.rel (%p75) target = $region12
      $region11: #{_maxpool2d.1} parent=5 // pred_region
        %s79 = ssub.s32 %s13, 1
      $region12: #{_maxpool2d.1} parent=5 // pred_fallthru
        _
      %p80 = scmp.lt.s32.totalorder %s13, 2
      // Predicated region
      $region13: #{_maxpool2d.1} parent=5 // pred_check
        %p81 = pneg %p80
      $region14: #{_maxpool2d.1} parent=5 // pred_check_branch
        %83 = sbr.rel (%p81) target = $region16
      $region15: #{_maxpool2d.1} parent=5 // pred_region
        // Predicated region
        $region17: #{_maxpool2d.1} parent=15 // pred_check
          %p84 = pneg %p33
        $region18: #{_maxpool2d.1} parent=15 // pred_check_branch
          %86 = sbr.rel (%p84) target = $region20
        $region19: #{_maxpool2d.1} parent=15 // pred_region
          %s87 = sand.u32 %s23, 1
          %s88 = scalar_lea.sflag [#allocation3], %s87
          %s89 = sand.u32 %s23, 1
          %s90 = smul.addr %s89, 64
          %s91 = scalar_lea.vmem [#allocation2], %s90
          %s92 = smul.u32 4, %s13
          %s94 = ssub.s32 1024, 1024
          %95 = vsyncadd %s88, %s94
          %s96 = smul.addr %s92, 2
          %s97 = smul.addr %s96, 128
          %s98 = scalar_lea.hbm %s0, %s97
          %s99 = sshll.u32 %s91, 4
          %s100 = int_to_ptr.vmem [resolvable:$true] %s99
          %105 = dma.hbm_to_vmem [thread:$0]  %s98, 1024, %s100, %s88, 128, 128, 8
        $region20: #{_maxpool2d.1} parent=15 // pred_fallthru
          _
      $region16: #{_maxpool2d.1} parent=5 // pred_fallthru
        _
      %p106 = scmp.le.s32.totalorder 1, %s13
      %p107 = scmp.lt.s32.totalorder %s13, 3
      %p108 = pnand %p106, %p107
      %p109 = pneg %p108
      // Predicated region
      $region21: #{_maxpool2d.1} parent=5 // pred_check
        _
      $region22: #{_maxpool2d.1} parent=5 // pred_check_branch
        %111 = sbr.rel (%p108) target = $region24
      $region23: #{_maxpool2d.1} parent=5 // pred_region
        %s112 = ssub.s32 %s13, 1
        %s113 = sand.u32 %s26, 1
        %s114 = scalar_lea.sflag [#allocation3], %s113
        %s115 = sand.u32 %s26, 1
        %s116 = smul.addr %s115, 64
        %s117 = scalar_lea.vmem [#allocation2], %s116
        // Predicated region
        $region25: #{_maxpool2d.1} parent=23 // pred_check
          %p118 = pneg %p39
        $region26: #{_maxpool2d.1} parent=23 // pred_check_branch
          %120 = sbr.rel (%p118) target = $region28
        $region27: #{_maxpool2d.1} parent=23 // pred_region
          %121 = dma.done %s114, 1024
        $region28: #{_maxpool2d.1} parent=23 // pred_fallthru
          _
        %s122 = sand.u32 %s26, 1
        %s123 = scalar_lea.sflag [#allocation3], %s122
        %s124 = sand.u32 %s26, 1
        %s125 = smul.addr %s124, 64
        %s126 = scalar_lea.vmem [#allocation2], %s125
        %p127 = pneg %p39
        %p128 = pneg %p36
        %p129 = pneg %p65
        %p130 = pneg %p62
        %s131 = sand.u32 %s52, 1
        %s132 = scalar_lea.sflag [#allocation4], %s131
        %s133 = sand.u32 %s52, 1
        %s134 = smul.addr %s133, 32
        %s135 = scalar_lea.vmem [#allocation5], %s134
        %s136 = smul.u32 4, %s18
        %s137 = smul.u32 4, %s18
        %v138 = vlaneseq
        %v139 = vshrl.u32 %v138, 7
        %v140 = vadd.s32 %v139, 8
        %v141 = vlaneseq
        %v142 = vand.u32 %v141, 127
        %v143 = vmul.u32 %v142, 2
        %v144 = vsub.s32 %v143, 1
        %vm145 = vcmp.eq.s32.totalorder %v139, %v144
        %vm146 = vcmp.eq.s32.totalorder %v140, %v144
        %v147 = vsel %vm145, 1, 0
        %v148 = vsel %vm146, 1, 0
        %v149 = vcvt.s32.f32 %v147
        %v150 = vcvt.s32.f32 %v148
        %vm151 = vcmp.eq.s32.totalorder %v139, %v143
        %vm152 = vcmp.eq.s32.totalorder %v140, %v143
        %v153 = vsel %vm151, 1, 0
        %v154 = vsel %vm152, 1, 0
        %v155 = vcvt.s32.f32 %v153
        %v156 = vcvt.s32.f32 %v154
        %v157 = vadd.s32 %v143, 2
        %v158 = vsub.s32 %v157, 1
        %vm159 = vcmp.eq.s32.totalorder %v139, %v158
        %vm160 = vcmp.eq.s32.totalorder %v140, %v158
        %v161 = vsel %vm159, 1, 0
        %v162 = vsel %vm160, 1, 0
        %v163 = vcvt.s32.f32 %v161
        %v164 = vcvt.s32.f32 %v162
        %v165 = vld [vmem:[%s117] sm:$0x1]
        %v166 = vld [vmem:[%s117 + $0x10] sm:$0x1]
        %v167 = vld [vmem:[%s117 + $0x20] sm:$0x1]
        %v168 = vld [vmem:[%s117 + $0x30] sm:$0x1]
        %v169 = vmax.f32 %v165, 0.0
        %v170 = vmax.f32 %v166, 0.0
        %v171 = vmax.f32 %v167, 0.0
        %v172 = vmax.f32 %v168, 0.0
        %v173 = vld [vmem:[%s117 + $0x1] sm:$0x1]
        %v174 = vld [vmem:[%s117 + $0x11] sm:$0x1]
        %v175 = vld [vmem:[%s117 + $0x21] sm:$0x1]
        %v176 = vld [vmem:[%s117 + $0x31] sm:$0x1]
        %v177 = vmax.f32 %v169, %v173
        %v178 = vmax.f32 %v170, %v174
        %v179 = vmax.f32 %v171, %v175
        %v180 = vmax.f32 %v172, %v176
        %v185 = vrot.slane %v178, 7
        %vm186 = vcmask 1041409
        %v187 = vsel %vm186, %v185, %v177
        %v188 = vrot.slane %v179, 6
        %vm189 = vcmask 1042434
        %v190 = vsel %vm189, %v188, %v187
        %v191 = vrot.slane %v180, 5
        %vm192 = vcmask 1043459
        %v193 = vsel %vm192, %v191, %v190
        %vm194 = vcmask 130048
        %v195 = vsel %vm194, %v193, 0
        %197 = vmatprep.subr.mxu0 0.0
        %198 = vmatpush1.msra.mxu0 %v149
        %199 = vmatprep.subr.mxu0 0.0
        %200 = vmatpush1.msra.mxu0 %v150
        %201 = vmatprep.subr.mxu0 0.0
        %202 = vmatpush1.msra.mxu0 0.0
        %203 = vmatprep.subr.mxu0 0.0
        %204 = vmatpush1.msra.mxu0 0.0
        %205 = vmatprep.subr.mxu0 0.0
        %206 = vmatpush1.msra.mxu0 0.0
        %207 = vmatprep.subr.mxu0 0.0
        %208 = vmatpush1.msra.mxu0 0.0
        %209 = vmatprep.subr.mxu0 0.0
        %210 = vmatpush1.msra.mxu0 0.0
        %211 = vmatprep.subr.mxu0 0.0
        %212 = vmatpush1.msra.mxu0 0.0
        %213 = vmatprep.subr.mxu0 0.0
        %214 = vmatpush1.msra.mxu0 0.0
        %215 = vmatprep.subr.mxu0 0.0
        %216 = vmatpush1.msra.mxu0 0.0
        %217 = vmatprep.subr.mxu0 0.0
        %218 = vmatpush1.msra.mxu0 0.0
        %219 = vmatprep.subr.mxu0 0.0
        %220 = vmatpush1.msra.mxu0 0.0
        %221 = vmatprep.subr.mxu0 0.0
        %222 = vmatpush1.msra.mxu0 0.0
        %223 = vmatprep.subr.mxu0 0.0
        %224 = vmatpush1.msra.mxu0 0.0
        %225 = vmatprep.subr.mxu0 0.0
        %226 = vmatpush1.msra.mxu0 0.0
        %227 = vmatprep.subr.mxu0 0.0
        %228 = vmatpush1.msra.mxu0 0.0
        %229 = vmatprep.subr.mxu0 0.0
        %230 = vmatpush1.msra.mxu0 0.0
        %231 = vmatprep.subr.mxu0 0.0
        %232 = vmatpush1.msra.mxu0 0.0
        %233 = vmatprep.subr.mxu0 0.0
        %234 = vmatpush1.msra.mxu0 0.0
        %235 = vmatprep.subr.mxu0 0.0
        %236 = vmatpush1.msra.mxu0 0.0
        %237 = vmatprep.subr.mxu0 0.0
        %238 = vmatpush1.msra.mxu0 0.0
        %239 = vmatprep.subr.mxu0 0.0
        %240 = vmatpush1.msra.mxu0 0.0
        %241 = vmatprep.subr.mxu0 0.0
        %242 = vmatpush1.msra.mxu0 0.0
        %243 = vmatprep.subr.mxu0 0.0
        %244 = vmatpush1.msra.mxu0 0.0
        %245 = vmatprep.subr.mxu0 0.0
        %246 = vmatpush1.msra.mxu0 0.0
        %247 = vmatprep.subr.mxu0 0.0
        %248 = vmatpush1.msra.mxu0 0.0
        %249 = vmatprep.subr.mxu0 0.0
        %250 = vmatpush1.msra.mxu0 0.0
        %251 = vmatprep.subr.mxu0 0.0
        %252 = vmatpush1.msra.mxu0 0.0
        %253 = vmatprep.subr.mxu0 0.0
        %254 = vmatpush1.msra.mxu0 0.0
        %255 = vmatprep.subr.mxu0 0.0
        %256 = vmatpush1.msra.mxu0 0.0
        %257 = vmatprep.subr.mxu0 0.0
        %258 = vmatpush1.msra.mxu0 0.0
        %259 = vmatprep.subr.mxu0 0.0
        %260 = vmatpush1.msra.mxu0 0.0
        %261 = vmatprep.mubr.f32.mxu0 0.0
        %262 = vmatmul.mubr.f32.gmra.mrb[0].mxu0 %v195
        %v263 = vpop.f32.mrb[0].mxu0
        %v264 = vadd.f32 0.0, %v263
        %v265 = vpop.f32.mrb[0].mxu0
        %266 = vdwg.mxu0
        %267 = vmatprep.subr.mxu0 0.0
        %268 = vmatpush1.msra.mxu0 %v155
        %269 = vmatprep.subr.mxu0 0.0
        %270 = vmatpush1.msra.mxu0 %v156
        %271 = vmatprep.subr.mxu0 0.0
        %272 = vmatpush1.msra.mxu0 0.0
        %273 = vmatprep.subr.mxu0 0.0
        %274 = vmatpush1.msra.mxu0 0.0
        %275 = vmatprep.subr.mxu0 0.0
        %276 = vmatpush1.msra.mxu0 0.0
        %277 = vmatprep.subr.mxu0 0.0
        %278 = vmatpush1.msra.mxu0 0.0
        %279 = vmatprep.subr.mxu0 0.0
        %280 = vmatpush1.msra.mxu0 0.0
        %281 = vmatprep.subr.mxu0 0.0
        %282 = vmatpush1.msra.mxu0 0.0
        %283 = vmatprep.subr.mxu0 0.0
        %284 = vmatpush1.msra.mxu0 0.0
        %285 = vmatprep.subr.mxu0 0.0
        %286 = vmatpush1.msra.mxu0 0.0
        %287 = vmatprep.subr.mxu0 0.0
        %288 = vmatpush1.msra.mxu0 0.0
        %289 = vmatprep.subr.mxu0 0.0
        %290 = vmatpush1.msra.mxu0 0.0
        %291 = vmatprep.subr.mxu0 0.0
        %292 = vmatpush1.msra.mxu0 0.0
        %293 = vmatprep.subr.mxu0 0.0
        %294 = vmatpush1.msra.mxu0 0.0
        %295 = vmatprep.subr.mxu0 0.0
        %296 = vmatpush1.msra.mxu0 0.0
        %297 = vmatprep.subr.mxu0 0.0
        %298 = vmatpush1.msra.mxu0 0.0
        %299 = vmatprep.subr.mxu0 0.0
        %300 = vmatpush1.msra.mxu0 0.0
        %301 = vmatprep.subr.mxu0 0.0
        %302 = vmatpush1.msra.mxu0 0.0
        %303 = vmatprep.subr.mxu0 0.0
        %304 = vmatpush1.msra.mxu0 0.0
        %305 = vmatprep.subr.mxu0 0.0
        %306 = vmatpush1.msra.mxu0 0.0
        %307 = vmatprep.subr.mxu0 0.0
        %308 = vmatpush1.msra.mxu0 0.0
        %309 = vmatprep.subr.mxu0 0.0
        %310 = vmatpush1.msra.mxu0 0.0
        %311 = vmatprep.subr.mxu0 0.0
        %312 = vmatpush1.msra.mxu0 0.0
        %313 = vmatprep.subr.mxu0 0.0
        %314 = vmatpush1.msra.mxu0 0.0
        %315 = vmatprep.subr.mxu0 0.0
        %316 = vmatpush1.msra.mxu0 0.0
        %317 = vmatprep.subr.mxu0 0.0
        %318 = vmatpush1.msra.mxu0 0.0
        %319 = vmatprep.subr.mxu0 0.0
        %320 = vmatpush1.msra.mxu0 0.0
        %321 = vmatprep.subr.mxu0 0.0
        %322 = vmatpush1.msra.mxu0 0.0
        %323 = vmatprep.subr.mxu0 0.0
        %324 = vmatpush1.msra.mxu0 0.0
        %325 = vmatprep.subr.mxu0 0.0
        %326 = vmatpush1.msra.mxu0 0.0
        %327 = vmatprep.subr.mxu0 0.0
        %328 = vmatpush1.msra.mxu0 0.0
        %329 = vmatprep.subr.mxu0 0.0
        %330 = vmatpush1.msra.mxu0 0.0
        %331 = vmatprep.mubr.f32.mxu0 0.0
        %332 = vmatmul.mubr.f32.gmra.mrb[0].mxu0 %v195
        %v333 = vpop.f32.mrb[0].mxu0
        %v334 = vadd.f32 0.0, %v333
        %v335 = vpop.f32.mrb[0].mxu0
        %336 = vdwg.mxu0
        %v337 = vmax.f32 %v264, %v334
        %338 = vmatprep.subr.mxu0 0.0
        %339 = vmatpush1.msra.mxu0 %v163
        %340 = vmatprep.subr.mxu0 0.0
        %341 = vmatpush1.msra.mxu0 %v164
        %342 = vmatprep.subr.mxu0 0.0
        %343 = vmatpush1.msra.mxu0 0.0
        %344 = vmatprep.subr.mxu0 0.0
        %345 = vmatpush1.msra.mxu0 0.0
        %346 = vmatprep.subr.mxu0 0.0
        %347 = vmatpush1.msra.mxu0 0.0
        %348 = vmatprep.subr.mxu0 0.0
        %349 = vmatpush1.msra.mxu0 0.0
        %350 = vmatprep.subr.mxu0 0.0
        %351 = vmatpush1.msra.mxu0 0.0
        %352 = vmatprep.subr.mxu0 0.0
        %353 = vmatpush1.msra.mxu0 0.0
        %354 = vmatprep.subr.mxu0 0.0
        %355 = vmatpush1.msra.mxu0 0.0
        %356 = vmatprep.subr.mxu0 0.0
        %357 = vmatpush1.msra.mxu0 0.0
        %358 = vmatprep.subr.mxu0 0.0
        %359 = vmatpush1.msra.mxu0 0.0
        %360 = vmatprep.subr.mxu0 0.0
        %361 = vmatpush1.msra.mxu0 0.0
        %362 = vmatprep.subr.mxu0 0.0
        %363 = vmatpush1.msra.mxu0 0.0
        %364 = vmatprep.subr.mxu0 0.0
        %365 = vmatpush1.msra.mxu0 0.0
        %366 = vmatprep.subr.mxu0 0.0
        %367 = vmatpush1.msra.mxu0 0.0
        %368 = vmatprep.subr.mxu0 0.0
        %369 = vmatpush1.msra.mxu0 0.0
        %370 = vmatprep.subr.mxu0 0.0
        %371 = vmatpush1.msra.mxu0 0.0
        %372 = vmatprep.subr.mxu0 0.0
        %373 = vmatpush1.msra.mxu0 0.0
        %374 = vmatprep.subr.mxu0 0.0
        %375 = vmatpush1.msra.mxu0 0.0
        %376 = vmatprep.subr.mxu0 0.0
        %377 = vmatpush1.msra.mxu0 0.0
        %378 = vmatprep.subr.mxu0 0.0
        %379 = vmatpush1.msra.mxu0 0.0
        %380 = vmatprep.subr.mxu0 0.0
        %381 = vmatpush1.msra.mxu0 0.0
        %382 = vmatprep.subr.mxu0 0.0
        %383 = vmatpush1.msra.mxu0 0.0
        %384 = vmatprep.subr.mxu0 0.0
        %385 = vmatpush1.msra.mxu0 0.0
        %386 = vmatprep.subr.mxu0 0.0
        %387 = vmatpush1.msra.mxu0 0.0
        %388 = vmatprep.subr.mxu0 0.0
        %389 = vmatpush1.msra.mxu0 0.0
        %390 = vmatprep.subr.mxu0 0.0
        %391 = vmatpush1.msra.mxu0 0.0
        %392 = vmatprep.subr.mxu0 0.0
        %393 = vmatpush1.msra.mxu0 0.0
        %394 = vmatprep.subr.mxu0 0.0
        %395 = vmatpush1.msra.mxu0 0.0
        %396 = vmatprep.subr.mxu0 0.0
        %397 = vmatpush1.msra.mxu0 0.0
        %398 = vmatprep.subr.mxu0 0.0
        %399 = vmatpush1.msra.mxu0 0.0
        %400 = vmatprep.subr.mxu0 0.0
        %401 = vmatpush1.msra.mxu0 0.0
        %402 = vmatprep.mubr.f32.mxu0 0.0
        %403 = vmatmul.mubr.f32.gmra.mrb[0].mxu0 %v195
        %v404 = vpop.f32.mrb[0].mxu0
        %v405 = vadd.f32 0.0, %v404
        %v406 = vpop.f32.mrb[0].mxu0
        %407 = vdwg.mxu0
        %v408 = vmax.f32 %v337, %v405
        %v411 = vunpack.c.l.s4 1966171168
        %v412 = vunpack.c.0.s8 %v411
        %v413 = vlaneseq
        %v414 = vshrl.u32 %v413, 7
        %v415 = vsub.s32 %v412, %v414
        %v416 = vrot.slane %v408, %v415
        %v417 = vcombine.high %v416, %v416
        %v419 = vunpack.c.l.s4 1966171168
        %v420 = vunpack.c.0.s8 %v419
        %v421 = vlaneseq
        %v422 = vshrl.u32 %v421, 7
        %v423 = vsub.s32 %v420, %v422
        %v424 = vrot.slane %v416, %v423
        %v426 = vunpack.c.l.s4 1966171168
        %v427 = vunpack.c.0.s8 %v426
        %v428 = vlaneseq
        %v429 = vshrl.u32 %v428, 7
        %v430 = vsub.s32 %v427, %v429
        %v431 = vrot.slane %v417, %v430
        %v432 = vcombine.high %v424, %v424
        %v433 = vcombine.high %v431, %v431
        %vm438 = vcmask 57344
        %439 = vst.msk [vmem:[%s135] sm:$0x1] %vm438, %v424
        %440 = vst.msk [vmem:[%s135 + $0x8] sm:$0x1] %vm438, %v431
        %441 = vst.msk [vmem:[%s135 + $0x10] sm:$0x1] %vm438, %v432
        %442 = vst.msk [vmem:[%s135 + $0x18] sm:$0x1] %vm438, %v433
        %v443 = vld [vmem:[%s117 + $0x1] sm:$0x1]
        %v444 = vld [vmem:[%s117 + $0x11] sm:$0x1]
        %v445 = vld [vmem:[%s117 + $0x21] sm:$0x1]
        %v446 = vld [vmem:[%s117 + $0x31] sm:$0x1]
        %v447 = vld [vmem:[%s117 + $0x2] sm:$0x1]
        %v448 = vld [vmem:[%s117 + $0x12] sm:$0x1]
        %v449 = vld [vmem:[%s117 + $0x22] sm:$0x1]
        %v450 = vld [vmem:[%s117 + $0x32] sm:$0x1]
        %v451 = vmax.f32 %v443, %v447
        %v452 = vmax.f32 %v444, %v448
        %v453 = vmax.f32 %v445, %v449
        %v454 = vmax.f32 %v446, %v450
        %v455 = vld [vmem:[%s117 + $0x3] sm:$0x1]
        %v456 = vld [vmem:[%s117 + $0x13] sm:$0x1]
        %v457 = vld [vmem:[%s117 + $0x23] sm:$0x1]
        %v458 = vld [vmem:[%s117 + $0x33] sm:$0x1]
        %v459 = vmax.f32 %v451, %v455
        %v460 = vmax.f32 %v452, %v456
        %v461 = vmax.f32 %v453, %v457
        %v462 = vmax.f32 %v454, %v458
        %v467 = vrot.slane %v460, 7
        %v468 = vsel %vm186, %v467, %v459
        %v469 = vrot.slane %v461, 6
        %v470 = vsel %vm189, %v469, %v468
        %v471 = vrot.slane %v462, 5
        %v472 = vsel %vm192, %v471, %v470
        %v473 = vsel %vm194, %v472, 0
        %475 = vmatprep.subr.mxu0 0.0
        %476 = vmatpush1.msra.mxu0 %v149
        %477 = vmatprep.subr.mxu0 0.0
        %478 = vmatpush1.msra.mxu0 %v150
        %479 = vmatprep.subr.mxu0 0.0
        %480 = vmatpush1.msra.mxu0 0.0
        %481 = vmatprep.subr.mxu0 0.0
        %482 = vmatpush1.msra.mxu0 0.0
        %483 = vmatprep.subr.mxu0 0.0
        %484 = vmatpush1.msra.mxu0 0.0
        %485 = vmatprep.subr.mxu0 0.0
        %486 = vmatpush1.msra.mxu0 0.0
        %487 = vmatprep.subr.mxu0 0.0
        %488 = vmatpush1.msra.mxu0 0.0
        %489 = vmatprep.subr.mxu0 0.0
        %490 = vmatpush1.msra.mxu0 0.0
        %491 = vmatprep.subr.mxu0 0.0
        %492 = vmatpush1.msra.mxu0 0.0
        %493 = vmatprep.subr.mxu0 0.0
        %494 = vmatpush1.msra.mxu0 0.0
        %495 = vmatprep.subr.mxu0 0.0
        %496 = vmatpush1.msra.mxu0 0.0
        %497 = vmatprep.subr.mxu0 0.0
        %498 = vmatpush1.msra.mxu0 0.0
        %499 = vmatprep.subr.mxu0 0.0
        %500 = vmatpush1.msra.mxu0 0.0
        %501 = vmatprep.subr.mxu0 0.0
        %502 = vmatpush1.msra.mxu0 0.0
        %503 = vmatprep.subr.mxu0 0.0
        %504 = vmatpush1.msra.mxu0 0.0
        %505 = vmatprep.subr.mxu0 0.0
        %506 = vmatpush1.msra.mxu0 0.0
        %507 = vmatprep.subr.mxu0 0.0
        %508 = vmatpush1.msra.mxu0 0.0
        %509 = vmatprep.subr.mxu0 0.0
        %510 = vmatpush1.msra.mxu0 0.0
        %511 = vmatprep.subr.mxu0 0.0
        %512 = vmatpush1.msra.mxu0 0.0
        %513 = vmatprep.subr.mxu0 0.0
        %514 = vmatpush1.msra.mxu0 0.0
        %515 = vmatprep.subr.mxu0 0.0
        %516 = vmatpush1.msra.mxu0 0.0
        %517 = vmatprep.subr.mxu0 0.0
        %518 = vmatpush1.msra.mxu0 0.0
        %519 = vmatprep.subr.mxu0 0.0
        %520 = vmatpush1.msra.mxu0 0.0
        %521 = vmatprep.subr.mxu0 0.0
        %522 = vmatpush1.msra.mxu0 0.0
        %523 = vmatprep.subr.mxu0 0.0
        %524 = vmatpush1.msra.mxu0 0.0
        %525 = vmatprep.subr.mxu0 0.0
        %526 = vmatpush1.msra.mxu0 0.0
        %527 = vmatprep.subr.mxu0 0.0
        %528 = vmatpush1.msra.mxu0 0.0
        %529 = vmatprep.subr.mxu0 0.0
        %530 = vmatpush1.msra.mxu0 0.0
        %531 = vmatprep.subr.mxu0 0.0
        %532 = vmatpush1.msra.mxu0 0.0
        %533 = vmatprep.subr.mxu0 0.0
        %534 = vmatpush1.msra.mxu0 0.0
        %535 = vmatprep.subr.mxu0 0.0
        %536 = vmatpush1.msra.mxu0 0.0
        %537 = vmatprep.subr.mxu0 0.0
        %538 = vmatpush1.msra.mxu0 0.0
        %539 = vmatprep.mubr.f32.mxu0 0.0
        %540 = vmatmul.mubr.f32.gmra.mrb[0].mxu0 %v473
        %v541 = vpop.f32.mrb[0].mxu0
        %v542 = vadd.f32 0.0, %v541
        %v543 = vpop.f32.mrb[0].mxu0
        %544 = vdwg.mxu0
        %545 = vmatprep.subr.mxu0 0.0
        %546 = vmatpush1.msra.mxu0 %v155
        %547 = vmatprep.subr.mxu0 0.0
        %548 = vmatpush1.msra.mxu0 %v156
        %549 = vmatprep.subr.mxu0 0.0
        %550 = vmatpush1.msra.mxu0 0.0
        %551 = vmatprep.subr.mxu0 0.0
        %552 = vmatpush1.msra.mxu0 0.0
        %553 = vmatprep.subr.mxu0 0.0
        %554 = vmatpush1.msra.mxu0 0.0
        %555 = vmatprep.subr.mxu0 0.0
        %556 = vmatpush1.msra.mxu0 0.0
        %557 = vmatprep.subr.mxu0 0.0
        %558 = vmatpush1.msra.mxu0 0.0
        %559 = vmatprep.subr.mxu0 0.0
        %560 = vmatpush1.msra.mxu0 0.0
        %561 = vmatprep.subr.mxu0 0.0
        %562 = vmatpush1.msra.mxu0 0.0
        %563 = vmatprep.subr.mxu0 0.0
        %564 = vmatpush1.msra.mxu0 0.0
        %565 = vmatprep.subr.mxu0 0.0
        %566 = vmatpush1.msra.mxu0 0.0
        %567 = vmatprep.subr.mxu0 0.0
        %568 = vmatpush1.msra.mxu0 0.0
        %569 = vmatprep.subr.mxu0 0.0
        %570 = vmatpush1.msra.mxu0 0.0
        %571 = vmatprep.subr.mxu0 0.0
        %572 = vmatpush1.msra.mxu0 0.0
        %573 = vmatprep.subr.mxu0 0.0
        %574 = vmatpush1.msra.mxu0 0.0
        %575 = vmatprep.subr.mxu0 0.0
        %576 = vmatpush1.msra.mxu0 0.0
        %577 = vmatprep.subr.mxu0 0.0
        %578 = vmatpush1.msra.mxu0 0.0
        %579 = vmatprep.subr.mxu0 0.0
        %580 = vmatpush1.msra.mxu0 0.0
        %581 = vmatprep.subr.mxu0 0.0
        %582 = vmatpush1.msra.mxu0 0.0
        %583 = vmatprep.subr.mxu0 0.0
        %584 = vmatpush1.msra.mxu0 0.0
        %585 = vmatprep.subr.mxu0 0.0
        %586 = vmatpush1.msra.mxu0 0.0
        %587 = vmatprep.subr.mxu0 0.0
        %588 = vmatpush1.msra.mxu0 0.0
        %589 = vmatprep.subr.mxu0 0.0
        %590 = vmatpush1.msra.mxu0 0.0
        %591 = vmatprep.subr.mxu0 0.0
        %592 = vmatpush1.msra.mxu0 0.0
        %593 = vmatprep.subr.mxu0 0.0
        %594 = vmatpush1.msra.mxu0 0.0
        %595 = vmatprep.subr.mxu0 0.0
        %596 = vmatpush1.msra.mxu0 0.0
        %597 = vmatprep.subr.mxu0 0.0
        %598 = vmatpush1.msra.mxu0 0.0
        %599 = vmatprep.subr.mxu0 0.0
        %600 = vmatpush1.msra.mxu0 0.0
        %601 = vmatprep.subr.mxu0 0.0
        %602 = vmatpush1.msra.mxu0 0.0
        %603 = vmatprep.subr.mxu0 0.0
        %604 = vmatpush1.msra.mxu0 0.0
        %605 = vmatprep.subr.mxu0 0.0
        %606 = vmatpush1.msra.mxu0 0.0
        %607 = vmatprep.subr.mxu0 0.0
        %608 = vmatpush1.msra.mxu0 0.0
        %609 = vmatprep.mubr.f32.mxu0 0.0
        %610 = vmatmul.mubr.f32.gmra.mrb[0].mxu0 %v473
        %v611 = vpop.f32.mrb[0].mxu0
        %v612 = vadd.f32 0.0, %v611
        %v613 = vpop.f32.mrb[0].mxu0
        %614 = vdwg.mxu0
        %v615 = vmax.f32 %v542, %v612
        %616 = vmatprep.subr.mxu0 0.0
        %617 = vmatpush1.msra.mxu0 %v163
        %618 = vmatprep.subr.mxu0 0.0
        %619 = vmatpush1.msra.mxu0 %v164
        %620 = vmatprep.subr.mxu0 0.0
        %621 = vmatpush1.msra.mxu0 0.0
        %622 = vmatprep.subr.mxu0 0.0
        %623 = vmatpush1.msra.mxu0 0.0
        %624 = vmatprep.subr.mxu0 0.0
        %625 = vmatpush1.msra.mxu0 0.0
        %626 = vmatprep.subr.mxu0 0.0
        %627 = vmatpush1.msra.mxu0 0.0
        %628 = vmatprep.subr.mxu0 0.0
        %629 = vmatpush1.msra.mxu0 0.0
        %630 = vmatprep.subr.mxu0 0.0
        %631 = vmatpush1.msra.mxu0 0.0
        %632 = vmatprep.subr.mxu0 0.0
        %633 = vmatpush1.msra.mxu0 0.0
        %634 = vmatprep.subr.mxu0 0.0
        %635 = vmatpush1.msra.mxu0 0.0
        %636 = vmatprep.subr.mxu0 0.0
        %637 = vmatpush1.msra.mxu0 0.0
        %638 = vmatprep.subr.mxu0 0.0
        %639 = vmatpush1.msra.mxu0 0.0
        %640 = vmatprep.subr.mxu0 0.0
        %641 = vmatpush1.msra.mxu0 0.0
        %642 = vmatprep.subr.mxu0 0.0
        %643 = vmatpush1.msra.mxu0 0.0
        %644 = vmatprep.subr.mxu0 0.0
        %645 = vmatpush1.msra.mxu0 0.0
        %646 = vmatprep.subr.mxu0 0.0
        %647 = vmatpush1.msra.mxu0 0.0
        %648 = vmatprep.subr.mxu0 0.0
        %649 = vmatpush1.msra.mxu0 0.0
        %650 = vmatprep.subr.mxu0 0.0
        %651 = vmatpush1.msra.mxu0 0.0
        %652 = vmatprep.subr.mxu0 0.0
        %653 = vmatpush1.msra.mxu0 0.0
        %654 = vmatprep.subr.mxu0 0.0
        %655 = vmatpush1.msra.mxu0 0.0
        %656 = vmatprep.subr.mxu0 0.0
        %657 = vmatpush1.msra.mxu0 0.0
        %658 = vmatprep.subr.mxu0 0.0
        %659 = vmatpush1.msra.mxu0 0.0
        %660 = vmatprep.subr.mxu0 0.0
        %661 = vmatpush1.msra.mxu0 0.0
        %662 = vmatprep.subr.mxu0 0.0
        %663 = vmatpush1.msra.mxu0 0.0
        %664 = vmatprep.subr.mxu0 0.0
        %665 = vmatpush1.msra.mxu0 0.0
        %666 = vmatprep.subr.mxu0 0.0
        %667 = vmatpush1.msra.mxu0 0.0
        %668 = vmatprep.subr.mxu0 0.0
        %669 = vmatpush1.msra.mxu0 0.0
        %670 = vmatprep.subr.mxu0 0.0
        %671 = vmatpush1.msra.mxu0 0.0
        %672 = vmatprep.subr.mxu0 0.0
        %673 = vmatpush1.msra.mxu0 0.0
        %674 = vmatprep.subr.mxu0 0.0
        %675 = vmatpush1.msra.mxu0 0.0
        %676 = vmatprep.subr.mxu0 0.0
        %677 = vmatpush1.msra.mxu0 0.0
        %678 = vmatprep.subr.mxu0 0.0
        %679 = vmatpush1.msra.mxu0 0.0
        %680 = vmatprep.mubr.f32.mxu0 0.0
        %681 = vmatmul.mubr.f32.gmra.mrb[0].mxu0 %v473
        %v682 = vpop.f32.mrb[0].mxu0
        %v683 = vadd.f32 0.0, %v682
        %v684 = vpop.f32.mrb[0].mxu0
        %685 = vdwg.mxu0
        %v686 = vmax.f32 %v615, %v683
        %v689 = vunpack.c.l.s4 1966171168
        %v690 = vunpack.c.0.s8 %v689
        %v691 = vlaneseq
        %v692 = vshrl.u32 %v691, 7
        %v693 = vsub.s32 %v690, %v692
        %v694 = vrot.slane %v686, %v693
        %v695 = vcombine.high %v694, %v694
        %v697 = vunpack.c.l.s4 1966171168
        %v698 = vunpack.c.0.s8 %v697
        %v699 = vlaneseq
        %v700 = vshrl.u32 %v699, 7
        %v701 = vsub.s32 %v698, %v700
        %v702 = vrot.slane %v694, %v701
        %v704 = vunpack.c.l.s4 1966171168
        %v705 = vunpack.c.0.s8 %v704
        %v706 = vlaneseq
        %v707 = vshrl.u32 %v706, 7
        %v708 = vsub.s32 %v705, %v707
        %v709 = vrot.slane %v695, %v708
        %v710 = vcombine.high %v702, %v702
        %v711 = vcombine.high %v709, %v709
        %716 = vst.msk [vmem:[%s135 + $0x1] sm:$0x1] %vm438, %v702
        %717 = vst.msk [vmem:[%s135 + $0x9] sm:$0x1] %vm438, %v709
        %718 = vst.msk [vmem:[%s135 + $0x11] sm:$0x1] %vm438, %v710
        %719 = vst.msk [vmem:[%s135 + $0x19] sm:$0x1] %vm438, %v711
        %v720 = vld [vmem:[%s117 + $0x3] sm:$0x1]
        %v721 = vld [vmem:[%s117 + $0x13] sm:$0x1]
        %v722 = vld [vmem:[%s117 + $0x23] sm:$0x1]
        %v723 = vld [vmem:[%s117 + $0x33] sm:$0x1]
        %v724 = vld [vmem:[%s117 + $0x4] sm:$0x1]
        %v725 = vld [vmem:[%s117 + $0x14] sm:$0x1]
        %v726 = vld [vmem:[%s117 + $0x24] sm:$0x1]
        %v727 = vld [vmem:[%s117 + $0x34] sm:$0x1]
        %v728 = vmax.f32 %v720, %v724
        %v729 = vmax.f32 %v721, %v725
        %v730 = vmax.f32 %v722, %v726
        %v731 = vmax.f32 %v723, %v727
        %v732 = vld [vmem:[%s117 + $0x5] sm:$0x1]
        %v733 = vld [vmem:[%s117 + $0x15] sm:$0x1]
        %v734 = vld [vmem:[%s117 + $0x25] sm:$0x1]
        %v735 = vld [vmem:[%s117 + $0x35] sm:$0x1]
        %v736 = vmax.f32 %v728, %v732
        %v737 = vmax.f32 %v729, %v733
        %v738 = vmax.f32 %v730, %v734
        %v739 = vmax.f32 %v731, %v735
        %v744 = vrot.slane %v737, 7
        %v745 = vsel %vm186, %v744, %v736
        %v746 = vrot.slane %v738, 6
        %v747 = vsel %vm189, %v746, %v745
        %v748 = vrot.slane %v739, 5
        %v749 = vsel %vm192, %v748, %v747
        %v750 = vsel %vm194, %v749, 0
        %752 = vmatprep.subr.mxu0 0.0
        %753 = vmatpush1.msra.mxu0 %v149
        %754 = vmatprep.subr.mxu0 0.0
        %755 = vmatpush1.msra.mxu0 %v150
        %756 = vmatprep.subr.mxu0 0.0
        %757 = vmatpush1.msra.mxu0 0.0
        %758 = vmatprep.subr.mxu0 0.0
        %759 = vmatpush1.msra.mxu0 0.0
        %760 = vmatprep.subr.mxu0 0.0
        %761 = vmatpush1.msra.mxu0 0.0
        %762 = vmatprep.subr.mxu0 0.0
        %763 = vmatpush1.msra.mxu0 0.0
        %764 = vmatprep.subr.mxu0 0.0
        %765 = vmatpush1.msra.mxu0 0.0
        %766 = vmatprep.subr.mxu0 0.0
        %767 = vmatpush1.msra.mxu0 0.0
        %768 = vmatprep.subr.mxu0 0.0
        %769 = vmatpush1.msra.mxu0 0.0
        %770 = vmatprep.subr.mxu0 0.0
        %771 = vmatpush1.msra.mxu0 0.0
        %772 = vmatprep.subr.mxu0 0.0
        %773 = vmatpush1.msra.mxu0 0.0
        %774 = vmatprep.subr.mxu0 0.0
        %775 = vmatpush1.msra.mxu0 0.0
        %776 = vmatprep.subr.mxu0 0.0
        %777 = vmatpush1.msra.mxu0 0.0
        %778 = vmatprep.subr.mxu0 0.0
        %779 = vmatpush1.msra.mxu0 0.0
        %780 = vmatprep.subr.mxu0 0.0
        %781 = vmatpush1.msra.mxu0 0.0
        %782 = vmatprep.subr.mxu0 0.0
        %783 = vmatpush1.msra.mxu0 0.0
        %784 = vmatprep.subr.mxu0 0.0
        %785 = vmatpush1.msra.mxu0 0.0
        %786 = vmatprep.subr.mxu0 0.0
        %787 = vmatpush1.msra.mxu0 0.0
        %788 = vmatprep.subr.mxu0 0.0
        %789 = vmatpush1.msra.mxu0 0.0
        %790 = vmatprep.subr.mxu0 0.0
        %791 = vmatpush1.msra.mxu0 0.0
        %792 = vmatprep.subr.mxu0 0.0
        %793 = vmatpush1.msra.mxu0 0.0
        %794 = vmatprep.subr.mxu0 0.0
        %795 = vmatpush1.msra.mxu0 0.0
        %796 = vmatprep.subr.mxu0 0.0
        %797 = vmatpush1.msra.mxu0 0.0
        %798 = vmatprep.subr.mxu0 0.0
        %799 = vmatpush1.msra.mxu0 0.0
        %800 = vmatprep.subr.mxu0 0.0
        %801 = vmatpush1.msra.mxu0 0.0
        %802 = vmatprep.subr.mxu0 0.0
        %803 = vmatpush1.msra.mxu0 0.0
        %804 = vmatprep.subr.mxu0 0.0
        %805 = vmatpush1.msra.mxu0 0.0
        %806 = vmatprep.subr.mxu0 0.0
        %807 = vmatpush1.msra.mxu0 0.0
        %808 = vmatprep.subr.mxu0 0.0
        %809 = vmatpush1.msra.mxu0 0.0
        %810 = vmatprep.subr.mxu0 0.0
        %811 = vmatpush1.msra.mxu0 0.0
        %812 = vmatprep.subr.mxu0 0.0
        %813 = vmatpush1.msra.mxu0 0.0
        %814 = vmatprep.subr.mxu0 0.0
        %815 = vmatpush1.msra.mxu0 0.0
        %816 = vmatprep.mubr.f32.mxu0 0.0
        %817 = vmatmul.mubr.f32.gmra.mrb[0].mxu0 %v750
        %v818 = vpop.f32.mrb[0].mxu0
        %v819 = vadd.f32 0.0, %v818
        %v820 = vpop.f32.mrb[0].mxu0
        %821 = vdwg.mxu0
        %822 = vmatprep.subr.mxu0 0.0
        %823 = vmatpush1.msra.mxu0 %v155
        %824 = vmatprep.subr.mxu0 0.0
        %825 = vmatpush1.msra.mxu0 %v156
        %826 = vmatprep.subr.mxu0 0.0
        %827 = vmatpush1.msra.mxu0 0.0
        %828 = vmatprep.subr.mxu0 0.0
        %829 = vmatpush1.msra.mxu0 0.0
        %830 = vmatprep.subr.mxu0 0.0
        %831 = vmatpush1.msra.mxu0 0.0
        %832 = vmatprep.subr.mxu0 0.0
        %833 = vmatpush1.msra.mxu0 0.0
        %834 = vmatprep.subr.mxu0 0.0
        %835 = vmatpush1.msra.mxu0 0.0
        %836 = vmatprep.subr.mxu0 0.0
        %837 = vmatpush1.msra.mxu0 0.0
        %838 = vmatprep.subr.mxu0 0.0
        %839 = vmatpush1.msra.mxu0 0.0
        %840 = vmatprep.subr.mxu0 0.0
        %841 = vmatpush1.msra.mxu0 0.0
        %842 = vmatprep.subr.mxu0 0.0
        %843 = vmatpush1.msra.mxu0 0.0
        %844 = vmatprep.subr.mxu0 0.0
        %845 = vmatpush1.msra.mxu0 0.0
        %846 = vmatprep.subr.mxu0 0.0
        %847 = vmatpush1.msra.mxu0 0.0
        %848 = vmatprep.subr.mxu0 0.0
        %849 = vmatpush1.msra.mxu0 0.0
        %850 = vmatprep.subr.mxu0 0.0
        %851 = vmatpush1.msra.mxu0 0.0
        %852 = vmatprep.subr.mxu0 0.0
        %853 = vmatpush1.msra.mxu0 0.0
        %854 = vmatprep.subr.mxu0 0.0
        %855 = vmatpush1.msra.mxu0 0.0
        %856 = vmatprep.subr.mxu0 0.0
        %857 = vmatpush1.msra.mxu0 0.0
        %858 = vmatprep.subr.mxu0 0.0
        %859 = vmatpush1.msra.mxu0 0.0
        %860 = vmatprep.subr.mxu0 0.0
        %861 = vmatpush1.msra.mxu0 0.0
        %862 = vmatprep.subr.mxu0 0.0
        %863 = vmatpush1.msra.mxu0 0.0
        %864 = vmatprep.subr.mxu0 0.0
        %865 = vmatpush1.msra.mxu0 0.0
        %866 = vmatprep.subr.mxu0 0.0
        %867 = vmatpush1.msra.mxu0 0.0
        %868 = vmatprep.subr.mxu0 0.0
        %869 = vmatpush1.msra.mxu0 0.0
        %870 = vmatprep.subr.mxu0 0.0
        %871 = vmatpush1.msra.mxu0 0.0
        %872 = vmatprep.subr.mxu0 0.0
        %873 = vmatpush1.msra.mxu0 0.0
        %874 = vmatprep.subr.mxu0 0.0
        %875 = vmatpush1.msra.mxu0 0.0
        %876 = vmatprep.subr.mxu0 0.0
        %877 = vmatpush1.msra.mxu0 0.0
        %878 = vmatprep.subr.mxu0 0.0
        %879 = vmatpush1.msra.mxu0 0.0
        %880 = vmatprep.subr.mxu0 0.0
        %881 = vmatpush1.msra.mxu0 0.0
        %882 = vmatprep.subr.mxu0 0.0
        %883 = vmatpush1.msra.mxu0 0.0
        %884 = vmatprep.subr.mxu0 0.0
        %885 = vmatpush1.msra.mxu0 0.0
        %886 = vmatprep.mubr.f32.mxu0 0.0
        %887 = vmatmul.mubr.f32.gmra.mrb[0].mxu0 %v750
        %v888 = vpop.f32.mrb[0].mxu0
        %v889 = vadd.f32 0.0, %v888
        %v890 = vpop.f32.mrb[0].mxu0
        %891 = vdwg.mxu0
        %v892 = vmax.f32 %v819, %v889
        %893 = vmatprep.subr.mxu0 0.0
        %894 = vmatpush1.msra.mxu0 %v163
        %895 = vmatprep.subr.mxu0 0.0
        %896 = vmatpush1.msra.mxu0 %v164
        %897 = vmatprep.subr.mxu0 0.0
        %898 = vmatpush1.msra.mxu0 0.0
        %899 = vmatprep.subr.mxu0 0.0
        %900 = vmatpush1.msra.mxu0 0.0
        %901 = vmatprep.subr.mxu0 0.0
        %902 = vmatpush1.msra.mxu0 0.0
        %903 = vmatprep.subr.mxu0 0.0
        %904 = vmatpush1.msra.mxu0 0.0
        %905 = vmatprep.subr.mxu0 0.0
        %906 = vmatpush1.msra.mxu0 0.0
        %907 = vmatprep.subr.mxu0 0.0
        %908 = vmatpush1.msra.mxu0 0.0
        %909 = vmatprep.subr.mxu0 0.0
        %910 = vmatpush1.msra.mxu0 0.0
        %911 = vmatprep.subr.mxu0 0.0
        %912 = vmatpush1.msra.mxu0 0.0
        %913 = vmatprep.subr.mxu0 0.0
        %914 = vmatpush1.msra.mxu0 0.0
        %915 = vmatprep.subr.mxu0 0.0
        %916 = vmatpush1.msra.mxu0 0.0
        %917 = vmatprep.subr.mxu0 0.0
        %918 = vmatpush1.msra.mxu0 0.0
        %919 = vmatprep.subr.mxu0 0.0
        %920 = vmatpush1.msra.mxu0 0.0
        %921 = vmatprep.subr.mxu0 0.0
        %922 = vmatpush1.msra.mxu0 0.0
        %923 = vmatprep.subr.mxu0 0.0
        %924 = vmatpush1.msra.mxu0 0.0
        %925 = vmatprep.subr.mxu0 0.0
        %926 = vmatpush1.msra.mxu0 0.0
        %927 = vmatprep.subr.mxu0 0.0
        %928 = vmatpush1.msra.mxu0 0.0
        %929 = vmatprep.subr.mxu0 0.0
        %930 = vmatpush1.msra.mxu0 0.0
        %931 = vmatprep.subr.mxu0 0.0
        %932 = vmatpush1.msra.mxu0 0.0
        %933 = vmatprep.subr.mxu0 0.0
        %934 = vmatpush1.msra.mxu0 0.0
        %935 = vmatprep.subr.mxu0 0.0
        %936 = vmatpush1.msra.mxu0 0.0
        %937 = vmatprep.subr.mxu0 0.0
        %938 = vmatpush1.msra.mxu0 0.0
        %939 = vmatprep.subr.mxu0 0.0
        %940 = vmatpush1.msra.mxu0 0.0
        %941 = vmatprep.subr.mxu0 0.0
        %942 = vmatpush1.msra.mxu0 0.0
        %943 = vmatprep.subr.mxu0 0.0
        %944 = vmatpush1.msra.mxu0 0.0
        %945 = vmatprep.subr.mxu0 0.0
        %946 = vmatpush1.msra.mxu0 0.0
        %947 = vmatprep.subr.mxu0 0.0
        %948 = vmatpush1.msra.mxu0 0.0
        %949 = vmatprep.subr.mxu0 0.0
        %950 = vmatpush1.msra.mxu0 0.0
        %951 = vmatprep.subr.mxu0 0.0
        %952 = vmatpush1.msra.mxu0 0.0
        %953 = vmatprep.subr.mxu0 0.0
        %954 = vmatpush1.msra.mxu0 0.0
        %955 = vmatprep.subr.mxu0 0.0
        %956 = vmatpush1.msra.mxu0 0.0
        %957 = vmatprep.mubr.f32.mxu0 0.0
        %958 = vmatmul.mubr.f32.gmra.mrb[0].mxu0 %v750
        %v959 = vpop.f32.mrb[0].mxu0
        %v960 = vadd.f32 0.0, %v959
        %v961 = vpop.f32.mrb[0].mxu0
        %962 = vdwg.mxu0
        %v963 = vmax.f32 %v892, %v960
        %v966 = vunpack.c.l.s4 1966171168
        %v967 = vunpack.c.0.s8 %v966
        %v968 = vlaneseq
        %v969 = vshrl.u32 %v968, 7
        %v970 = vsub.s32 %v967, %v969
        %v971 = vrot.slane %v963, %v970
        %v972 = vcombine.high %v971, %v971
        %v974 = vunpack.c.l.s4 1966171168
        %v975 = vunpack.c.0.s8 %v974
        %v976 = vlaneseq
        %v977 = vshrl.u32 %v976, 7
        %v978 = vsub.s32 %v975, %v977
        %v979 = vrot.slane %v971, %v978
        %v981 = vunpack.c.l.s4 1966171168
        %v982 = vunpack.c.0.s8 %v981
        %v983 = vlaneseq
        %v984 = vshrl.u32 %v983, 7
        %v985 = vsub.s32 %v982, %v984
        %v986 = vrot.slane %v972, %v985
        %v987 = vcombine.high %v979, %v979
        %v988 = vcombine.high %v986, %v986
        %993 = vst.msk [vmem:[%s135 + $0x2] sm:$0x1] %vm438, %v979
        %994 = vst.msk [vmem:[%s135 + $0xa] sm:$0x1] %vm438, %v986
        %995 = vst.msk [vmem:[%s135 + $0x12] sm:$0x1] %vm438, %v987
        %996 = vst.msk [vmem:[%s135 + $0x1a] sm:$0x1] %vm438, %v988
        %v997 = vld [vmem:[%s117 + $0x5] sm:$0x1]
        %v998 = vld [vmem:[%s117 + $0x15] sm:$0x1]
        %v999 = vld [vmem:[%s117 + $0x25] sm:$0x1]
        %v1000 = vld [vmem:[%s117 + $0x35] sm:$0x1]
        %v1001 = vld [vmem:[%s117 + $0x6] sm:$0x1]
        %v1002 = vld [vmem:[%s117 + $0x16] sm:$0x1]
        %v1003 = vld [vmem:[%s117 + $0x26] sm:$0x1]
        %v1004 = vld [vmem:[%s117 + $0x36] sm:$0x1]
        %v1005 = vmax.f32 %v997, %v1001
        %v1006 = vmax.f32 %v998, %v1002
        %v1007 = vmax.f32 %v999, %v1003
        %v1008 = vmax.f32 %v1000, %v1004
        %v1009 = vld [vmem:[%s117 + $0x7] sm:$0x1]
        %v1010 = vld [vmem:[%s117 + $0x17] sm:$0x1]
        %v1011 = vld [vmem:[%s117 + $0x27] sm:$0x1]
        %v1012 = vld [vmem:[%s117 + $0x37] sm:$0x1]
        %v1013 = vmax.f32 %v1005, %v1009
        %v1014 = vmax.f32 %v1006, %v1010
        %v1015 = vmax.f32 %v1007, %v1011
        %v1016 = vmax.f32 %v1008, %v1012
        %v1021 = vrot.slane %v1014, 7
        %v1022 = vsel %vm186, %v1021, %v1013
        %v1023 = vrot.slane %v1015, 6
        %v1024 = vsel %vm189, %v1023, %v1022
        %v1025 = vrot.slane %v1016, 5
        %v1026 = vsel %vm192, %v1025, %v1024
        %v1027 = vsel %vm194, %v1026, 0
        %1029 = vmatprep.subr.mxu0 0.0
        %1030 = vmatpush1.msra.mxu0 %v149
        %1031 = vmatprep.subr.mxu0 0.0
        %1032 = vmatpush1.msra.mxu0 %v150
        %1033 = vmatprep.subr.mxu0 0.0
        %1034 = vmatpush1.msra.mxu0 0.0
        %1035 = vmatprep.subr.mxu0 0.0
        %1036 = vmatpush1.msra.mxu0 0.0
        %1037 = vmatprep.subr.mxu0 0.0
        %1038 = vmatpush1.msra.mxu0 0.0
        %1039 = vmatprep.subr.mxu0 0.0
        %1040 = vmatpush1.msra.mxu0 0.0
        %1041 = vmatprep.subr.mxu0 0.0
        %1042 = vmatpush1.msra.mxu0 0.0
        %1043 = vmatprep.subr.mxu0 0.0
        %1044 = vmatpush1.msra.mxu0 0.0
        %1045 = vmatprep.subr.mxu0 0.0
        %1046 = vmatpush1.msra.mxu0 0.0
        %1047 = vmatprep.subr.mxu0 0.0
        %1048 = vmatpush1.msra.mxu0 0.0
        %1049 = vmatprep.subr.mxu0 0.0
        %1050 = vmatpush1.msra.mxu0 0.0
        %1051 = vmatprep.subr.mxu0 0.0
        %1052 = vmatpush1.msra.mxu0 0.0
        %1053 = vmatprep.subr.mxu0 0.0
        %1054 = vmatpush1.msra.mxu0 0.0
        %1055 = vmatprep.subr.mxu0 0.0
        %1056 = vmatpush1.msra.mxu0 0.0
        %1057 = vmatprep.subr.mxu0 0.0
        %1058 = vmatpush1.msra.mxu0 0.0
        %1059 = vmatprep.subr.mxu0 0.0
        %1060 = vmatpush1.msra.mxu0 0.0
        %1061 = vmatprep.subr.mxu0 0.0
        %1062 = vmatpush1.msra.mxu0 0.0
        %1063 = vmatprep.subr.mxu0 0.0
        %1064 = vmatpush1.msra.mxu0 0.0
        %1065 = vmatprep.subr.mxu0 0.0
        %1066 = vmatpush1.msra.mxu0 0.0
        %1067 = vmatprep.subr.mxu0 0.0
        %1068 = vmatpush1.msra.mxu0 0.0
        %1069 = vmatprep.subr.mxu0 0.0
        %1070 = vmatpush1.msra.mxu0 0.0
        %1071 = vmatprep.subr.mxu0 0.0
        %1072 = vmatpush1.msra.mxu0 0.0
        %1073 = vmatprep.subr.mxu0 0.0
        %1074 = vmatpush1.msra.mxu0 0.0
        %1075 = vmatprep.subr.mxu0 0.0
        %1076 = vmatpush1.msra.mxu0 0.0
        %1077 = vmatprep.subr.mxu0 0.0
        %1078 = vmatpush1.msra.mxu0 0.0
        %1079 = vmatprep.subr.mxu0 0.0
        %1080 = vmatpush1.msra.mxu0 0.0
        %1081 = vmatprep.subr.mxu0 0.0
        %1082 = vmatpush1.msra.mxu0 0.0
        %1083 = vmatprep.subr.mxu0 0.0
        %1084 = vmatpush1.msra.mxu0 0.0
        %1085 = vmatprep.subr.mxu0 0.0
        %1086 = vmatpush1.msra.mxu0 0.0
        %1087 = vmatprep.subr.mxu0 0.0
        %1088 = vmatpush1.msra.mxu0 0.0
        %1089 = vmatprep.subr.mxu0 0.0
        %1090 = vmatpush1.msra.mxu0 0.0
        %1091 = vmatprep.subr.mxu0 0.0
        %1092 = vmatpush1.msra.mxu0 0.0
        %1093 = vmatprep.mubr.f32.mxu0 0.0
        %1094 = vmatmul.mubr.f32.gmra.mrb[0].mxu0 %v1027
        %v1095 = vpop.f32.mrb[0].mxu0
        %v1096 = vadd.f32 0.0, %v1095
        %v1097 = vpop.f32.mrb[0].mxu0
        %1098 = vdwg.mxu0
        %1099 = vmatprep.subr.mxu0 0.0
        %1100 = vmatpush1.msra.mxu0 %v155
        %1101 = vmatprep.subr.mxu0 0.0
        %1102 = vmatpush1.msra.mxu0 %v156
        %1103 = vmatprep.subr.mxu0 0.0
        %1104 = vmatpush1.msra.mxu0 0.0
        %1105 = vmatprep.subr.mxu0 0.0
        %1106 = vmatpush1.msra.mxu0 0.0
        %1107 = vmatprep.subr.mxu0 0.0
        %1108 = vmatpush1.msra.mxu0 0.0
        %1109 = vmatprep.subr.mxu0 0.0
        %1110 = vmatpush1.msra.mxu0 0.0
        %1111 = vmatprep.subr.mxu0 0.0
        %1112 = vmatpush1.msra.mxu0 0.0
        %1113 = vmatprep.subr.mxu0 0.0
        %1114 = vmatpush1.msra.mxu0 0.0
        %1115 = vmatprep.subr.mxu0 0.0
        %1116 = vmatpush1.msra.mxu0 0.0
        %1117 = vmatprep.subr.mxu0 0.0
        %1118 = vmatpush1.msra.mxu0 0.0
        %1119 = vmatprep.subr.mxu0 0.0
        %1120 = vmatpush1.msra.mxu0 0.0
        %1121 = vmatprep.subr.mxu0 0.0
        %1122 = vmatpush1.msra.mxu0 0.0
        %1123 = vmatprep.subr.mxu0 0.0
        %1124 = vmatpush1.msra.mxu0 0.0
        %1125 = vmatprep.subr.mxu0 0.0
        %1126 = vmatpush1.msra.mxu0 0.0
        %1127 = vmatprep.subr.mxu0 0.0
        %1128 = vmatpush1.msra.mxu0 0.0
        %1129 = vmatprep.subr.mxu0 0.0
        %1130 = vmatpush1.msra.mxu0 0.0
        %1131 = vmatprep.subr.mxu0 0.0
        %1132 = vmatpush1.msra.mxu0 0.0
        %1133 = vmatprep.subr.mxu0 0.0
        %1134 = vmatpush1.msra.mxu0 0.0
        %1135 = vmatprep.subr.mxu0 0.0
        %1136 = vmatpush1.msra.mxu0 0.0
        %1137 = vmatprep.subr.mxu0 0.0
        %1138 = vmatpush1.msra.mxu0 0.0
        %1139 = vmatprep.subr.mxu0 0.0
        %1140 = vmatpush1.msra.mxu0 0.0
        %1141 = vmatprep.subr.mxu0 0.0
        %1142 = vmatpush1.msra.mxu0 0.0
        %1143 = vmatprep.subr.mxu0 0.0
        %1144 = vmatpush1.msra.mxu0 0.0
        %1145 = vmatprep.subr.mxu0 0.0
        %1146 = vmatpush1.msra.mxu0 0.0
        %1147 = vmatprep.subr.mxu0 0.0
        %1148 = vmatpush1.msra.mxu0 0.0
        %1149 = vmatprep.subr.mxu0 0.0
        %1150 = vmatpush1.msra.mxu0 0.0
        %1151 = vmatprep.subr.mxu0 0.0
        %1152 = vmatpush1.msra.mxu0 0.0
        %1153 = vmatprep.subr.mxu0 0.0
        %1154 = vmatpush1.msra.mxu0 0.0
        %1155 = vmatprep.subr.mxu0 0.0
        %1156 = vmatpush1.msra.mxu0 0.0
        %1157 = vmatprep.subr.mxu0 0.0
        %1158 = vmatpush1.msra.mxu0 0.0
        %1159 = vmatprep.subr.mxu0 0.0
        %1160 = vmatpush1.msra.mxu0 0.0
        %1161 = vmatprep.subr.mxu0 0.0
        %1162 = vmatpush1.msra.mxu0 0.0
        %1163 = vmatprep.mubr.f32.mxu0 0.0
        %1164 = vmatmul.mubr.f32.gmra.mrb[0].mxu0 %v1027
        %v1165 = vpop.f32.mrb[0].mxu0
        %v1166 = vadd.f32 0.0, %v1165
        %v1167 = vpop.f32.mrb[0].mxu0
        %1168 = vdwg.mxu0
        %v1169 = vmax.f32 %v1096, %v1166
        %1170 = vmatprep.subr.mxu0 0.0
        %1171 = vmatpush1.msra.mxu0 %v163
        %1172 = vmatprep.subr.mxu0 0.0
        %1173 = vmatpush1.msra.mxu0 %v164
        %1174 = vmatprep.subr.mxu0 0.0
        %1175 = vmatpush1.msra.mxu0 0.0
        %1176 = vmatprep.subr.mxu0 0.0
        %1177 = vmatpush1.msra.mxu0 0.0
        %1178 = vmatprep.subr.mxu0 0.0
        %1179 = vmatpush1.msra.mxu0 0.0
        %1180 = vmatprep.subr.mxu0 0.0
        %1181 = vmatpush1.msra.mxu0 0.0
        %1182 = vmatprep.subr.mxu0 0.0
        %1183 = vmatpush1.msra.mxu0 0.0
        %1184 = vmatprep.subr.mxu0 0.0
        %1185 = vmatpush1.msra.mxu0 0.0
        %1186 = vmatprep.subr.mxu0 0.0
        %1187 = vmatpush1.msra.mxu0 0.0
        %1188 = vmatprep.subr.mxu0 0.0
        %1189 = vmatpush1.msra.mxu0 0.0
        %1190 = vmatprep.subr.mxu0 0.0
        %1191 = vmatpush1.msra.mxu0 0.0
        %1192 = vmatprep.subr.mxu0 0.0
        %1193 = vmatpush1.msra.mxu0 0.0
        %1194 = vmatprep.subr.mxu0 0.0
        %1195 = vmatpush1.msra.mxu0 0.0
        %1196 = vmatprep.subr.mxu0 0.0
        %1197 = vmatpush1.msra.mxu0 0.0
        %1198 = vmatprep.subr.mxu0 0.0
        %1199 = vmatpush1.msra.mxu0 0.0
        %1200 = vmatprep.subr.mxu0 0.0
        %1201 = vmatpush1.msra.mxu0 0.0
        %1202 = vmatprep.subr.mxu0 0.0
        %1203 = vmatpush1.msra.mxu0 0.0
        %1204 = vmatprep.subr.mxu0 0.0
        %1205 = vmatpush1.msra.mxu0 0.0
        %1206 = vmatprep.subr.mxu0 0.0
        %1207 = vmatpush1.msra.mxu0 0.0
        %1208 = vmatprep.subr.mxu0 0.0
        %1209 = vmatpush1.msra.mxu0 0.0
        %1210 = vmatprep.subr.mxu0 0.0
        %1211 = vmatpush1.msra.mxu0 0.0
        %1212 = vmatprep.subr.mxu0 0.0
        %1213 = vmatpush1.msra.mxu0 0.0
        %1214 = vmatprep.subr.mxu0 0.0
        %1215 = vmatpush1.msra.mxu0 0.0
        %1216 = vmatprep.subr.mxu0 0.0
        %1217 = vmatpush1.msra.mxu0 0.0
        %1218 = vmatprep.subr.mxu0 0.0
        %1219 = vmatpush1.msra.mxu0 0.0
        %1220 = vmatprep.subr.mxu0 0.0
        %1221 = vmatpush1.msra.mxu0 0.0
        %1222 = vmatprep.subr.mxu0 0.0
        %1223 = vmatpush1.msra.mxu0 0.0
        %1224 = vmatprep.subr.mxu0 0.0
        %1225 = vmatpush1.msra.mxu0 0.0
        %1226 = vmatprep.subr.mxu0 0.0
        %1227 = vmatpush1.msra.mxu0 0.0
        %1228 = vmatprep.subr.mxu0 0.0
        %1229 = vmatpush1.msra.mxu0 0.0
        %1230 = vmatprep.subr.mxu0 0.0
        %1231 = vmatpush1.msra.mxu0 0.0
        %1232 = vmatprep.subr.mxu0 0.0
        %1233 = vmatpush1.msra.mxu0 0.0
        %1234 = vmatprep.mubr.f32.mxu0 0.0
        %1235 = vmatmul.mubr.f32.gmra.mrb[0].mxu0 %v1027
        %v1236 = vpop.f32.mrb[0].mxu0
        %v1237 = vadd.f32 0.0, %v1236
        %v1238 = vpop.f32.mrb[0].mxu0
        %1239 = vdwg.mxu0
        %v1240 = vmax.f32 %v1169, %v1237
        %v1243 = vunpack.c.l.s4 1966171168
        %v1244 = vunpack.c.0.s8 %v1243
        %v1245 = vlaneseq
        %v1246 = vshrl.u32 %v1245, 7
        %v1247 = vsub.s32 %v1244, %v1246
        %v1248 = vrot.slane %v1240, %v1247
        %v1249 = vcombine.high %v1248, %v1248
        %v1251 = vunpack.c.l.s4 1966171168
        %v1252 = vunpack.c.0.s8 %v1251
        %v1253 = vlaneseq
        %v1254 = vshrl.u32 %v1253, 7
        %v1255 = vsub.s32 %v1252, %v1254
        %v1256 = vrot.slane %v1248, %v1255
        %v1258 = vunpack.c.l.s4 1966171168
        %v1259 = vunpack.c.0.s8 %v1258
        %v1260 = vlaneseq
        %v1261 = vshrl.u32 %v1260, 7
        %v1262 = vsub.s32 %v1259, %v1261
        %v1263 = vrot.slane %v1249, %v1262
        %v1264 = vcombine.high %v1256, %v1256
        %v1265 = vcombine.high %v1263, %v1263
        %1270 = vst.msk [vmem:[%s135 + $0x3] sm:$0x1] %vm438, %v1256
        %1271 = vst.msk [vmem:[%s135 + $0xb] sm:$0x1] %vm438, %v1263
        %1272 = vst.msk [vmem:[%s135 + $0x13] sm:$0x1] %vm438, %v1264
        %1273 = vst.msk [vmem:[%s135 + $0x1b] sm:$0x1] %vm438, %v1265
        %v1274 = vld [vmem:[%s117 + $0x7] sm:$0x1]
        %v1275 = vld [vmem:[%s117 + $0x17] sm:$0x1]
        %v1276 = vld [vmem:[%s117 + $0x27] sm:$0x1]
        %v1277 = vld [vmem:[%s117 + $0x37] sm:$0x1]
        %v1278 = vld [vmem:[%s117 + $0x8] sm:$0x1]
        %v1279 = vld [vmem:[%s117 + $0x18] sm:$0x1]
        %v1280 = vld [vmem:[%s117 + $0x28] sm:$0x1]
        %v1281 = vld [vmem:[%s117 + $0x38] sm:$0x1]
        %v1282 = vmax.f32 %v1274, %v1278
        %v1283 = vmax.f32 %v1275, %v1279
        %v1284 = vmax.f32 %v1276, %v1280
        %v1285 = vmax.f32 %v1277, %v1281
        %v1286 = vld [vmem:[%s117 + $0x9] sm:$0x1]
        %v1287 = vld [vmem:[%s117 + $0x19] sm:$0x1]
        %v1288 = vld [vmem:[%s117 + $0x29] sm:$0x1]
        %v1289 = vld [vmem:[%s117 + $0x39] sm:$0x1]
        %v1290 = vmax.f32 %v1282, %v1286
        %v1291 = vmax.f32 %v1283, %v1287
        %v1292 = vmax.f32 %v1284, %v1288
        %v1293 = vmax.f32 %v1285, %v1289
        %v1298 = vrot.slane %v1291, 7
        %v1299 = vsel %vm186, %v1298, %v1290
        %v1300 = vrot.slane %v1292, 6
        %v1301 = vsel %vm189, %v1300, %v1299
        %v1302 = vrot.slane %v1293, 5
        %v1303 = vsel %vm192, %v1302, %v1301
        %v1304 = vsel %vm194, %v1303, 0
        %1306 = vmatprep.subr.mxu0 0.0
        %1307 = vmatpush1.msra.mxu0 %v149
        %1308 = vmatprep.subr.mxu0 0.0
        %1309 = vmatpush1.msra.mxu0 %v150
        %1310 = vmatprep.subr.mxu0 0.0
        %1311 = vmatpush1.msra.mxu0 0.0
        %1312 = vmatprep.subr.mxu0 0.0
        %1313 = vmatpush1.msra.mxu0 0.0
        %1314 = vmatprep.subr.mxu0 0.0
        %1315 = vmatpush1.msra.mxu0 0.0
        %1316 = vmatprep.subr.mxu0 0.0
        %1317 = vmatpush1.msra.mxu0 0.0
        %1318 = vmatprep.subr.mxu0 0.0
        %1319 = vmatpush1.msra.mxu0 0.0
        %1320 = vmatprep.subr.mxu0 0.0
        %1321 = vmatpush1.msra.mxu0 0.0
        %1322 = vmatprep.subr.mxu0 0.0
        %1323 = vmatpush1.msra.mxu0 0.0
        %1324 = vmatprep.subr.mxu0 0.0
        %1325 = vmatpush1.msra.mxu0 0.0
        %1326 = vmatprep.subr.mxu0 0.0
        %1327 = vmatpush1.msra.mxu0 0.0
        %1328 = vmatprep.subr.mxu0 0.0
        %1329 = vmatpush1.msra.mxu0 0.0
        %1330 = vmatprep.subr.mxu0 0.0
        %1331 = vmatpush1.msra.mxu0 0.0
        %1332 = vmatprep.subr.mxu0 0.0
        %1333 = vmatpush1.msra.mxu0 0.0
        %1334 = vmatprep.subr.mxu0 0.0
        %1335 = vmatpush1.msra.mxu0 0.0
        %1336 = vmatprep.subr.mxu0 0.0
        %1337 = vmatpush1.msra.mxu0 0.0
        %1338 = vmatprep.subr.mxu0 0.0
        %1339 = vmatpush1.msra.mxu0 0.0
        %1340 = vmatprep.subr.mxu0 0.0
        %1341 = vmatpush1.msra.mxu0 0.0
        %1342 = vmatprep.subr.mxu0 0.0
        %1343 = vmatpush1.msra.mxu0 0.0
        %1344 = vmatprep.subr.mxu0 0.0
        %1345 = vmatpush1.msra.mxu0 0.0
        %1346 = vmatprep.subr.mxu0 0.0
        %1347 = vmatpush1.msra.mxu0 0.0
        %1348 = vmatprep.subr.mxu0 0.0
        %1349 = vmatpush1.msra.mxu0 0.0
        %1350 = vmatprep.subr.mxu0 0.0
        %1351 = vmatpush1.msra.mxu0 0.0
        %1352 = vmatprep.subr.mxu0 0.0
        %1353 = vmatpush1.msra.mxu0 0.0
        %1354 = vmatprep.subr.mxu0 0.0
        %1355 = vmatpush1.msra.mxu0 0.0
        %1356 = vmatprep.subr.mxu0 0.0
        %1357 = vmatpush1.msra.mxu0 0.0
        %1358 = vmatprep.subr.mxu0 0.0
        %1359 = vmatpush1.msra.mxu0 0.0
        %1360 = vmatprep.subr.mxu0 0.0
        %1361 = vmatpush1.msra.mxu0 0.0
        %1362 = vmatprep.subr.mxu0 0.0
        %1363 = vmatpush1.msra.mxu0 0.0
        %1364 = vmatprep.subr.mxu0 0.0
        %1365 = vmatpush1.msra.mxu0 0.0
        %1366 = vmatprep.subr.mxu0 0.0
        %1367 = vmatpush1.msra.mxu0 0.0
        %1368 = vmatprep.subr.mxu0 0.0
        %1369 = vmatpush1.msra.mxu0 0.0
        %1370 = vmatprep.mubr.f32.mxu0 0.0
        %1371 = vmatmul.mubr.f32.gmra.mrb[0].mxu0 %v1304
        %v1372 = vpop.f32.mrb[0].mxu0
        %v1373 = vadd.f32 0.0, %v1372
        %v1374 = vpop.f32.mrb[0].mxu0
        %1375 = vdwg.mxu0
        %1376 = vmatprep.subr.mxu0 0.0
        %1377 = vmatpush1.msra.mxu0 %v155
        %1378 = vmatprep.subr.mxu0 0.0
        %1379 = vmatpush1.msra.mxu0 %v156
        %1380 = vmatprep.subr.mxu0 0.0
        %1381 = vmatpush1.msra.mxu0 0.0
        %1382 = vmatprep.subr.mxu0 0.0
        %1383 = vmatpush1.msra.mxu0 0.0
        %1384 = vmatprep.subr.mxu0 0.0
        %1385 = vmatpush1.msra.mxu0 0.0
        %1386 = vmatprep.subr.mxu0 0.0
        %1387 = vmatpush1.msra.mxu0 0.0
        %1388 = vmatprep.subr.mxu0 0.0
        %1389 = vmatpush1.msra.mxu0 0.0
        %1390 = vmatprep.subr.mxu0 0.0
        %1391 = vmatpush1.msra.mxu0 0.0
        %1392 = vmatprep.subr.mxu0 0.0
        %1393 = vmatpush1.msra.mxu0 0.0
        %1394 = vmatprep.subr.mxu0 0.0
        %1395 = vmatpush1.msra.mxu0 0.0
        %1396 = vmatprep.subr.mxu0 0.0
        %1397 = vmatpush1.msra.mxu0 0.0
        %1398 = vmatprep.subr.mxu0 0.0
        %1399 = vmatpush1.msra.mxu0 0.0
        %1400 = vmatprep.subr.mxu0 0.0
        %1401 = vmatpush1.msra.mxu0 0.0
        %1402 = vmatprep.subr.mxu0 0.0
        %1403 = vmatpush1.msra.mxu0 0.0
        %1404 = vmatprep.subr.mxu0 0.0
        %1405 = vmatpush1.msra.mxu0 0.0
        %1406 = vmatprep.subr.mxu0 0.0
        %1407 = vmatpush1.msra.mxu0 0.0
        %1408 = vmatprep.subr.mxu0 0.0
        %1409 = vmatpush1.msra.mxu0 0.0
        %1410 = vmatprep.subr.mxu0 0.0
        %1411 = vmatpush1.msra.mxu0 0.0
        %1412 = vmatprep.subr.mxu0 0.0
        %1413 = vmatpush1.msra.mxu0 0.0
        %1414 = vmatprep.subr.mxu0 0.0
        %1415 = vmatpush1.msra.mxu0 0.0
        %1416 = vmatprep.subr.mxu0 0.0
        %1417 = vmatpush1.msra.mxu0 0.0
        %1418 = vmatprep.subr.mxu0 0.0
        %1419 = vmatpush1.msra.mxu0 0.0
        %1420 = vmatprep.subr.mxu0 0.0
        %1421 = vmatpush1.msra.mxu0 0.0
        %1422 = vmatprep.subr.mxu0 0.0
        %1423 = vmatpush1.msra.mxu0 0.0
        %1424 = vmatprep.subr.mxu0 0.0
        %1425 = vmatpush1.msra.mxu0 0.0
        %1426 = vmatprep.subr.mxu0 0.0
        %1427 = vmatpush1.msra.mxu0 0.0
        %1428 = vmatprep.subr.mxu0 0.0
        %1429 = vmatpush1.msra.mxu0 0.0
        %1430 = vmatprep.subr.mxu0 0.0
        %1431 = vmatpush1.msra.mxu0 0.0
        %1432 = vmatprep.subr.mxu0 0.0
        %1433 = vmatpush1.msra.mxu0 0.0
        %1434 = vmatprep.subr.mxu0 0.0
        %1435 = vmatpush1.msra.mxu0 0.0
        %1436 = vmatprep.subr.mxu0 0.0
        %1437 = vmatpush1.msra.mxu0 0.0
        %1438 = vmatprep.subr.mxu0 0.0
        %1439 = vmatpush1.msra.mxu0 0.0
        %1440 = vmatprep.mubr.f32.mxu0 0.0
        %1441 = vmatmul.mubr.f32.gmra.mrb[0].mxu0 %v1304
        %v1442 = vpop.f32.mrb[0].mxu0
        %v1443 = vadd.f32 0.0, %v1442
        %v1444 = vpop.f32.mrb[0].mxu0
        %1445 = vdwg.mxu0
        %v1446 = vmax.f32 %v1373, %v1443
        %1447 = vmatprep.subr.mxu0 0.0
        %1448 = vmatpush1.msra.mxu0 %v163
        %1449 = vmatprep.subr.mxu0 0.0
        %1450 = vmatpush1.msra.mxu0 %v164
        %1451 = vmatprep.subr.mxu0 0.0
        %1452 = vmatpush1.msra.mxu0 0.0
        %1453 = vmatprep.subr.mxu0 0.0
        %1454 = vmatpush1.msra.mxu0 0.0
        %1455 = vmatprep.subr.mxu0 0.0
        %1456 = vmatpush1.msra.mxu0 0.0
        %1457 = vmatprep.subr.mxu0 0.0
        %1458 = vmatpush1.msra.mxu0 0.0
        %1459 = vmatprep.subr.mxu0 0.0
        %1460 = vmatpush1.msra.mxu0 0.0
        %1461 = vmatprep.subr.mxu0 0.0
        %1462 = vmatpush1.msra.mxu0 0.0
        %1463 = vmatprep.subr.mxu0 0.0
        %1464 = vmatpush1.msra.mxu0 0.0
        %1465 = vmatprep.subr.mxu0 0.0
        %1466 = vmatpush1.msra.mxu0 0.0
        %1467 = vmatprep.subr.mxu0 0.0
        %1468 = vmatpush1.msra.mxu0 0.0
        %1469 = vmatprep.subr.mxu0 0.0
        %1470 = vmatpush1.msra.mxu0 0.0
        %1471 = vmatprep.subr.mxu0 0.0
        %1472 = vmatpush1.msra.mxu0 0.0
        %1473 = vmatprep.subr.mxu0 0.0
        %1474 = vmatpush1.msra.mxu0 0.0
        %1475 = vmatprep.subr.mxu0 0.0
        %1476 = vmatpush1.msra.mxu0 0.0
        %1477 = vmatprep.subr.mxu0 0.0
        %1478 = vmatpush1.msra.mxu0 0.0
        %1479 = vmatprep.subr.mxu0 0.0
        %1480 = vmatpush1.msra.mxu0 0.0
        %1481 = vmatprep.subr.mxu0 0.0
        %1482 = vmatpush1.msra.mxu0 0.0
        %1483 = vmatprep.subr.mxu0 0.0
        %1484 = vmatpush1.msra.mxu0 0.0
        %1485 = vmatprep.subr.mxu0 0.0
        %1486 = vmatpush1.msra.mxu0 0.0
        %1487 = vmatprep.subr.mxu0 0.0
        %1488 = vmatpush1.msra.mxu0 0.0
        %1489 = vmatprep.subr.mxu0 0.0
        %1490 = vmatpush1.msra.mxu0 0.0
        %1491 = vmatprep.subr.mxu0 0.0
        %1492 = vmatpush1.msra.mxu0 0.0
        %1493 = vmatprep.subr.mxu0 0.0
        %1494 = vmatpush1.msra.mxu0 0.0
        %1495 = vmatprep.subr.mxu0 0.0
        %1496 = vmatpush1.msra.mxu0 0.0
        %1497 = vmatprep.subr.mxu0 0.0
        %1498 = vmatpush1.msra.mxu0 0.0
        %1499 = vmatprep.subr.mxu0 0.0
        %1500 = vmatpush1.msra.mxu0 0.0
        %1501 = vmatprep.subr.mxu0 0.0
        %1502 = vmatpush1.msra.mxu0 0.0
        %1503 = vmatprep.subr.mxu0 0.0
        %1504 = vmatpush1.msra.mxu0 0.0
        %1505 = vmatprep.subr.mxu0 0.0
        %1506 = vmatpush1.msra.mxu0 0.0
        %1507 = vmatprep.subr.mxu0 0.0
        %1508 = vmatpush1.msra.mxu0 0.0
        %1509 = vmatprep.subr.mxu0 0.0
        %1510 = vmatpush1.msra.mxu0 0.0
        %1511 = vmatprep.mubr.f32.mxu0 0.0
        %1512 = vmatmul.mubr.f32.gmra.mrb[0].mxu0 %v1304
        %v1513 = vpop.f32.mrb[0].mxu0
        %v1514 = vadd.f32 0.0, %v1513
        %v1515 = vpop.f32.mrb[0].mxu0
        %1516 = vdwg.mxu0
        %v1517 = vmax.f32 %v1446, %v1514
        %v1520 = vunpack.c.l.s4 1966171168
        %v1521 = vunpack.c.0.s8 %v1520
        %v1522 = vlaneseq
        %v1523 = vshrl.u32 %v1522, 7
        %v1524 = vsub.s32 %v1521, %v1523
        %v1525 = vrot.slane %v1517, %v1524
        %v1526 = vcombine.high %v1525, %v1525
        %v1528 = vunpack.c.l.s4 1966171168
        %v1529 = vunpack.c.0.s8 %v1528
        %v1530 = vlaneseq
        %v1531 = vshrl.u32 %v1530, 7
        %v1532 = vsub.s32 %v1529, %v1531
        %v1533 = vrot.slane %v1525, %v1532
        %v1535 = vunpack.c.l.s4 1966171168
        %v1536 = vunpack.c.0.s8 %v1535
        %v1537 = vlaneseq
        %v1538 = vshrl.u32 %v1537, 7
        %v1539 = vsub.s32 %v1536, %v1538
        %v1540 = vrot.slane %v1526, %v1539
        %v1541 = vcombine.high %v1533, %v1533
        %v1542 = vcombine.high %v1540, %v1540
        %1547 = vst.msk [vmem:[%s135 + $0x4] sm:$0x1] %vm438, %v1533
        %1548 = vst.msk [vmem:[%s135 + $0xc] sm:$0x1] %vm438, %v1540
        %1549 = vst.msk [vmem:[%s135 + $0x14] sm:$0x1] %vm438, %v1541
        %1550 = vst.msk [vmem:[%s135 + $0x1c] sm:$0x1] %vm438, %v1542
        %v1551 = vld [vmem:[%s117 + $0x9] sm:$0x1]
        %v1552 = vld [vmem:[%s117 + $0x19] sm:$0x1]
        %v1553 = vld [vmem:[%s117 + $0x29] sm:$0x1]
        %v1554 = vld [vmem:[%s117 + $0x39] sm:$0x1]
        %v1555 = vld [vmem:[%s117 + $0xa] sm:$0x1]
        %v1556 = vld [vmem:[%s117 + $0x1a] sm:$0x1]
        %v1557 = vld [vmem:[%s117 + $0x2a] sm:$0x1]
        %v1558 = vld [vmem:[%s117 + $0x3a] sm:$0x1]
        %v1559 = vmax.f32 %v1551, %v1555
        %v1560 = vmax.f32 %v1552, %v1556
        %v1561 = vmax.f32 %v1553, %v1557
        %v1562 = vmax.f32 %v1554, %v1558
        %v1563 = vld [vmem:[%s117 + $0xb] sm:$0x1]
        %v1564 = vld [vmem:[%s117 + $0x1b] sm:$0x1]
        %v1565 = vld [vmem:[%s117 + $0x2b] sm:$0x1]
        %v1566 = vld [vmem:[%s117 + $0x3b] sm:$0x1]
        %v1567 = vmax.f32 %v1559, %v1563
        %v1568 = vmax.f32 %v1560, %v1564
        %v1569 = vmax.f32 %v1561, %v1565
        %v1570 = vmax.f32 %v1562, %v1566
        %v1575 = vrot.slane %v1568, 7
        %v1576 = vsel %vm186, %v1575, %v1567
        %v1577 = vrot.slane %v1569, 6
        %v1578 = vsel %vm189, %v1577, %v1576
        %v1579 = vrot.slane %v1570, 5
        %v1580 = vsel %vm192, %v1579, %v1578
        %v1581 = vsel %vm194, %v1580, 0
        %1583 = vmatprep.subr.mxu0 0.0
        %1584 = vmatpush1.msra.mxu0 %v149
        %1585 = vmatprep.subr.mxu0 0.0
        %1586 = vmatpush1.msra.mxu0 %v150
        %1587 = vmatprep.subr.mxu0 0.0
        %1588 = vmatpush1.msra.mxu0 0.0
        %1589 = vmatprep.subr.mxu0 0.0
        %1590 = vmatpush1.msra.mxu0 0.0
        %1591 = vmatprep.subr.mxu0 0.0
        %1592 = vmatpush1.msra.mxu0 0.0
        %1593 = vmatprep.subr.mxu0 0.0
        %1594 = vmatpush1.msra.mxu0 0.0
        %1595 = vmatprep.subr.mxu0 0.0
        %1596 = vmatpush1.msra.mxu0 0.0
        %1597 = vmatprep.subr.mxu0 0.0
        %1598 = vmatpush1.msra.mxu0 0.0
        %1599 = vmatprep.subr.mxu0 0.0
        %1600 = vmatpush1.msra.mxu0 0.0
        %1601 = vmatprep.subr.mxu0 0.0
        %1602 = vmatpush1.msra.mxu0 0.0
        %1603 = vmatprep.subr.mxu0 0.0
        %1604 = vmatpush1.msra.mxu0 0.0
        %1605 = vmatprep.subr.mxu0 0.0
        %1606 = vmatpush1.msra.mxu0 0.0
        %1607 = vmatprep.subr.mxu0 0.0
        %1608 = vmatpush1.msra.mxu0 0.0
        %1609 = vmatprep.subr.mxu0 0.0
        %1610 = vmatpush1.msra.mxu0 0.0
        %1611 = vmatprep.subr.mxu0 0.0
        %1612 = vmatpush1.msra.mxu0 0.0
        %1613 = vmatprep.subr.mxu0 0.0
        %1614 = vmatpush1.msra.mxu0 0.0
        %1615 = vmatprep.subr.mxu0 0.0
        %1616 = vmatpush1.msra.mxu0 0.0
        %1617 = vmatprep.subr.mxu0 0.0
        %1618 = vmatpush1.msra.mxu0 0.0
        %1619 = vmatprep.subr.mxu0 0.0
        %1620 = vmatpush1.msra.mxu0 0.0
        %1621 = vmatprep.subr.mxu0 0.0
        %1622 = vmatpush1.msra.mxu0 0.0
        %1623 = vmatprep.subr.mxu0 0.0
        %1624 = vmatpush1.msra.mxu0 0.0
        %1625 = vmatprep.subr.mxu0 0.0
        %1626 = vmatpush1.msra.mxu0 0.0
        %1627 = vmatprep.subr.mxu0 0.0
        %1628 = vmatpush1.msra.mxu0 0.0
        %1629 = vmatprep.subr.mxu0 0.0
        %1630 = vmatpush1.msra.mxu0 0.0
        %1631 = vmatprep.subr.mxu0 0.0
        %1632 = vmatpush1.msra.mxu0 0.0
        %1633 = vmatprep.subr.mxu0 0.0
        %1634 = vmatpush1.msra.mxu0 0.0
        %1635 = vmatprep.subr.mxu0 0.0
        %1636 = vmatpush1.msra.mxu0 0.0
        %1637 = vmatprep.subr.mxu0 0.0
        %1638 = vmatpush1.msra.mxu0 0.0
        %1639 = vmatprep.subr.mxu0 0.0
        %1640 = vmatpush1.msra.mxu0 0.0
        %1641 = vmatprep.subr.mxu0 0.0
        %1642 = vmatpush1.msra.mxu0 0.0
        %1643 = vmatprep.subr.mxu0 0.0
        %1644 = vmatpush1.msra.mxu0 0.0
        %1645 = vmatprep.subr.mxu0 0.0
        %1646 = vmatpush1.msra.mxu0 0.0
        %1647 = vmatprep.mubr.f32.mxu0 0.0
        %1648 = vmatmul.mubr.f32.gmra.mrb[0].mxu0 %v1581
        %v1649 = vpop.f32.mrb[0].mxu0
        %v1650 = vadd.f32 0.0, %v1649
        %v1651 = vpop.f32.mrb[0].mxu0
        %1652 = vdwg.mxu0
        %1653 = vmatprep.subr.mxu0 0.0
        %1654 = vmatpush1.msra.mxu0 %v155
        %1655 = vmatprep.subr.mxu0 0.0
        %1656 = vmatpush1.msra.mxu0 %v156
        %1657 = vmatprep.subr.mxu0 0.0
        %1658 = vmatpush1.msra.mxu0 0.0
        %1659 = vmatprep.subr.mxu0 0.0
        %1660 = vmatpush1.msra.mxu0 0.0
        %1661 = vmatprep.subr.mxu0 0.0
        %1662 = vmatpush1.msra.mxu0 0.0
        %1663 = vmatprep.subr.mxu0 0.0
        %1664 = vmatpush1.msra.mxu0 0.0
        %1665 = vmatprep.subr.mxu0 0.0
        %1666 = vmatpush1.msra.mxu0 0.0
        %1667 = vmatprep.subr.mxu0 0.0
        %1668 = vmatpush1.msra.mxu0 0.0
        %1669 = vmatprep.subr.mxu0 0.0
        %1670 = vmatpush1.msra.mxu0 0.0
        %1671 = vmatprep.subr.mxu0 0.0
        %1672 = vmatpush1.msra.mxu0 0.0
        %1673 = vmatprep.subr.mxu0 0.0
        %1674 = vmatpush1.msra.mxu0 0.0
        %1675 = vmatprep.subr.mxu0 0.0
        %1676 = vmatpush1.msra.mxu0 0.0
        %1677 = vmatprep.subr.mxu0 0.0
        %1678 = vmatpush1.msra.mxu0 0.0
        %1679 = vmatprep.subr.mxu0 0.0
        %1680 = vmatpush1.msra.mxu0 0.0
        %1681 = vmatprep.subr.mxu0 0.0
        %1682 = vmatpush1.msra.mxu0 0.0
        %1683 = vmatprep.subr.mxu0 0.0
        %1684 = vmatpush1.msra.mxu0 0.0
        %1685 = vmatprep.subr.mxu0 0.0
        %1686 = vmatpush1.msra.mxu0 0.0
        %1687 = vmatprep.subr.mxu0 0.0
        %1688 = vmatpush1.msra.mxu0 0.0
        %1689 = vmatprep.subr.mxu0 0.0
        %1690 = vmatpush1.msra.mxu0 0.0
        %1691 = vmatprep.subr.mxu0 0.0
        %1692 = vmatpush1.msra.mxu0 0.0
        %1693 = vmatprep.subr.mxu0 0.0
        %1694 = vmatpush1.msra.mxu0 0.0
        %1695 = vmatprep.subr.mxu0 0.0
        %1696 = vmatpush1.msra.mxu0 0.0
        %1697 = vmatprep.subr.mxu0 0.0
        %1698 = vmatpush1.msra.mxu0 0.0
        %1699 = vmatprep.subr.mxu0 0.0
        %1700 = vmatpush1.msra.mxu0 0.0
        %1701 = vmatprep.subr.mxu0 0.0
        %1702 = vmatpush1.msra.mxu0 0.0
        %1703 = vmatprep.subr.mxu0 0.0
        %1704 = vmatpush1.msra.mxu0 0.0
        %1705 = vmatprep.subr.mxu0 0.0
        %1706 = vmatpush1.msra.mxu0 0.0
        %1707 = vmatprep.subr.mxu0 0.0
        %1708 = vmatpush1.msra.mxu0 0.0
        %1709 = vmatprep.subr.mxu0 0.0
        %1710 = vmatpush1.msra.mxu0 0.0
        %1711 = vmatprep.subr.mxu0 0.0
        %1712 = vmatpush1.msra.mxu0 0.0
        %1713 = vmatprep.subr.mxu0 0.0
        %1714 = vmatpush1.msra.mxu0 0.0
        %1715 = vmatprep.subr.mxu0 0.0
        %1716 = vmatpush1.msra.mxu0 0.0
        %1717 = vmatprep.mubr.f32.mxu0 0.0
        %1718 = vmatmul.mubr.f32.gmra.mrb[0].mxu0 %v1581
        %v1719 = vpop.f32.mrb[0].mxu0
        %v1720 = vadd.f32 0.0, %v1719
        %v1721 = vpop.f32.mrb[0].mxu0
        %1722 = vdwg.mxu0
        %v1723 = vmax.f32 %v1650, %v1720
        %1724 = vmatprep.subr.mxu0 0.0
        %1725 = vmatpush1.msra.mxu0 %v163
        %1726 = vmatprep.subr.mxu0 0.0
        %1727 = vmatpush1.msra.mxu0 %v164
        %1728 = vmatprep.subr.mxu0 0.0
        %1729 = vmatpush1.msra.mxu0 0.0
        %1730 = vmatprep.subr.mxu0 0.0
        %1731 = vmatpush1.msra.mxu0 0.0
        %1732 = vmatprep.subr.mxu0 0.0
        %1733 = vmatpush1.msra.mxu0 0.0
        %1734 = vmatprep.subr.mxu0 0.0
        %1735 = vmatpush1.msra.mxu0 0.0
        %1736 = vmatprep.subr.mxu0 0.0
        %1737 = vmatpush1.msra.mxu0 0.0
        %1738 = vmatprep.subr.mxu0 0.0
        %1739 = vmatpush1.msra.mxu0 0.0
        %1740 = vmatprep.subr.mxu0 0.0
        %1741 = vmatpush1.msra.mxu0 0.0
        %1742 = vmatprep.subr.mxu0 0.0
        %1743 = vmatpush1.msra.mxu0 0.0
        %1744 = vmatprep.subr.mxu0 0.0
        %1745 = vmatpush1.msra.mxu0 0.0
        %1746 = vmatprep.subr.mxu0 0.0
        %1747 = vmatpush1.msra.mxu0 0.0
        %1748 = vmatprep.subr.mxu0 0.0
        %1749 = vmatpush1.msra.mxu0 0.0
        %1750 = vmatprep.subr.mxu0 0.0
        %1751 = vmatpush1.msra.mxu0 0.0
        %1752 = vmatprep.subr.mxu0 0.0
        %1753 = vmatpush1.msra.mxu0 0.0
        %1754 = vmatprep.subr.mxu0 0.0
        %1755 = vmatpush1.msra.mxu0 0.0
        %1756 = vmatprep.subr.mxu0 0.0
        %1757 = vmatpush1.msra.mxu0 0.0
        %1758 = vmatprep.subr.mxu0 0.0
        %1759 = vmatpush1.msra.mxu0 0.0
        %1760 = vmatprep.subr.mxu0 0.0
        %1761 = vmatpush1.msra.mxu0 0.0
        %1762 = vmatprep.subr.mxu0 0.0
        %1763 = vmatpush1.msra.mxu0 0.0
        %1764 = vmatprep.subr.mxu0 0.0
        %1765 = vmatpush1.msra.mxu0 0.0
        %1766 = vmatprep.subr.mxu0 0.0
        %1767 = vmatpush1.msra.mxu0 0.0
        %1768 = vmatprep.subr.mxu0 0.0
        %1769 = vmatpush1.msra.mxu0 0.0
        %1770 = vmatprep.subr.mxu0 0.0
        %1771 = vmatpush1.msra.mxu0 0.0
        %1772 = vmatprep.subr.mxu0 0.0
        %1773 = vmatpush1.msra.mxu0 0.0
        %1774 = vmatprep.subr.mxu0 0.0
        %1775 = vmatpush1.msra.mxu0 0.0
        %1776 = vmatprep.subr.mxu0 0.0
        %1777 = vmatpush1.msra.mxu0 0.0
        %1778 = vmatprep.subr.mxu0 0.0
        %1779 = vmatpush1.msra.mxu0 0.0
        %1780 = vmatprep.subr.mxu0 0.0
        %1781 = vmatpush1.msra.mxu0 0.0
        %1782 = vmatprep.subr.mxu0 0.0
        %1783 = vmatpush1.msra.mxu0 0.0
        %1784 = vmatprep.subr.mxu0 0.0
        %1785 = vmatpush1.msra.mxu0 0.0
        %1786 = vmatprep.subr.mxu0 0.0
        %1787 = vmatpush1.msra.mxu0 0.0
        %1788 = vmatprep.mubr.f32.mxu0 0.0
        %1789 = vmatmul.mubr.f32.gmra.mrb[0].mxu0 %v1581
        %v1790 = vpop.f32.mrb[0].mxu0
        %v1791 = vadd.f32 0.0, %v1790
        %v1792 = vpop.f32.mrb[0].mxu0
        %1793 = vdwg.mxu0
        %v1794 = vmax.f32 %v1723, %v1791
        %v1797 = vunpack.c.l.s4 1966171168
        %v1798 = vunpack.c.0.s8 %v1797
        %v1799 = vlaneseq
        %v1800 = vshrl.u32 %v1799, 7
        %v1801 = vsub.s32 %v1798, %v1800
        %v1802 = vrot.slane %v1794, %v1801
        %v1803 = vcombine.high %v1802, %v1802
        %v1805 = vunpack.c.l.s4 1966171168
        %v1806 = vunpack.c.0.s8 %v1805
        %v1807 = vlaneseq
        %v1808 = vshrl.u32 %v1807, 7
        %v1809 = vsub.s32 %v1806, %v1808
        %v1810 = vrot.slane %v1802, %v1809
        %v1812 = vunpack.c.l.s4 1966171168
        %v1813 = vunpack.c.0.s8 %v1812
        %v1814 = vlaneseq
        %v1815 = vshrl.u32 %v1814, 7
        %v1816 = vsub.s32 %v1813, %v1815
        %v1817 = vrot.slane %v1803, %v1816
        %v1818 = vcombine.high %v1810, %v1810
        %v1819 = vcombine.high %v1817, %v1817
        %1824 = vst.msk [vmem:[%s135 + $0x5] sm:$0x1] %vm438, %v1810
        %1825 = vst.msk [vmem:[%s135 + $0xd] sm:$0x1] %vm438, %v1817
        %1826 = vst.msk [vmem:[%s135 + $0x15] sm:$0x1] %vm438, %v1818
        %1827 = vst.msk [vmem:[%s135 + $0x1d] sm:$0x1] %vm438, %v1819
        %v1828 = vld [vmem:[%s117 + $0xb] sm:$0x1]
        %v1829 = vld [vmem:[%s117 + $0x1b] sm:$0x1]
        %v1830 = vld [vmem:[%s117 + $0x2b] sm:$0x1]
        %v1831 = vld [vmem:[%s117 + $0x3b] sm:$0x1]
        %v1832 = vld [vmem:[%s117 + $0xc] sm:$0x1]
        %v1833 = vld [vmem:[%s117 + $0x1c] sm:$0x1]
        %v1834 = vld [vmem:[%s117 + $0x2c] sm:$0x1]
        %v1835 = vld [vmem:[%s117 + $0x3c] sm:$0x1]
        %v1836 = vmax.f32 %v1828, %v1832
        %v1837 = vmax.f32 %v1829, %v1833
        %v1838 = vmax.f32 %v1830, %v1834
        %v1839 = vmax.f32 %v1831, %v1835
        %v1840 = vld [vmem:[%s117 + $0xd] sm:$0x1]
        %v1841 = vld [vmem:[%s117 + $0x1d] sm:$0x1]
        %v1842 = vld [vmem:[%s117 + $0x2d] sm:$0x1]
        %v1843 = vld [vmem:[%s117 + $0x3d] sm:$0x1]
        %v1844 = vmax.f32 %v1836, %v1840
        %v1845 = vmax.f32 %v1837, %v1841
        %v1846 = vmax.f32 %v1838, %v1842
        %v1847 = vmax.f32 %v1839, %v1843
        %v1852 = vrot.slane %v1845, 7
        %v1853 = vsel %vm186, %v1852, %v1844
        %v1854 = vrot.slane %v1846, 6
        %v1855 = vsel %vm189, %v1854, %v1853
        %v1856 = vrot.slane %v1847, 5
        %v1857 = vsel %vm192, %v1856, %v1855
        %v1858 = vsel %vm194, %v1857, 0
        %1860 = vmatprep.subr.mxu0 0.0
        %1861 = vmatpush1.msra.mxu0 %v149
        %1862 = vmatprep.subr.mxu0 0.0
        %1863 = vmatpush1.msra.mxu0 %v150
        %1864 = vmatprep.subr.mxu0 0.0
        %1865 = vmatpush1.msra.mxu0 0.0
        %1866 = vmatprep.subr.mxu0 0.0
        %1867 = vmatpush1.msra.mxu0 0.0
        %1868 = vmatprep.subr.mxu0 0.0
        %1869 = vmatpush1.msra.mxu0 0.0
        %1870 = vmatprep.subr.mxu0 0.0
        %1871 = vmatpush1.msra.mxu0 0.0
        %1872 = vmatprep.subr.mxu0 0.0
        %1873 = vmatpush1.msra.mxu0 0.0
        %1874 = vmatprep.subr.mxu0 0.0
        %1875 = vmatpush1.msra.mxu0 0.0
        %1876 = vmatprep.subr.mxu0 0.0
        %1877 = vmatpush1.msra.mxu0 0.0
        %1878 = vmatprep.subr.mxu0 0.0
        %1879 = vmatpush1.msra.mxu0 0.0
        %1880 = vmatprep.subr.mxu0 0.0
        %1881 = vmatpush1.msra.mxu0 0.0
        %1882 = vmatprep.subr.mxu0 0.0
        %1883 = vmatpush1.msra.mxu0 0.0
        %1884 = vmatprep.subr.mxu0 0.0
        %1885 = vmatpush1.msra.mxu0 0.0
        %1886 = vmatprep.subr.mxu0 0.0
        %1887 = vmatpush1.msra.mxu0 0.0
        %1888 = vmatprep.subr.mxu0 0.0
        %1889 = vmatpush1.msra.mxu0 0.0
        %1890 = vmatprep.subr.mxu0 0.0
        %1891 = vmatpush1.msra.mxu0 0.0
        %1892 = vmatprep.subr.mxu0 0.0
        %1893 = vmatpush1.msra.mxu0 0.0
        %1894 = vmatprep.subr.mxu0 0.0
        %1895 = vmatpush1.msra.mxu0 0.0
        %1896 = vmatprep.subr.mxu0 0.0
        %1897 = vmatpush1.msra.mxu0 0.0
        %1898 = vmatprep.subr.mxu0 0.0
        %1899 = vmatpush1.msra.mxu0 0.0
        %1900 = vmatprep.subr.mxu0 0.0
        %1901 = vmatpush1.msra.mxu0 0.0
        %1902 = vmatprep.subr.mxu0 0.0
        %1903 = vmatpush1.msra.mxu0 0.0
        %1904 = vmatprep.subr.mxu0 0.0
        %1905 = vmatpush1.msra.mxu0 0.0
        %1906 = vmatprep.subr.mxu0 0.0
        %1907 = vmatpush1.msra.mxu0 0.0
        %1908 = vmatprep.subr.mxu0 0.0
        %1909 = vmatpush1.msra.mxu0 0.0
        %1910 = vmatprep.subr.mxu0 0.0
        %1911 = vmatpush1.msra.mxu0 0.0
        %1912 = vmatprep.subr.mxu0 0.0
        %1913 = vmatpush1.msra.mxu0 0.0
        %1914 = vmatprep.subr.mxu0 0.0
        %1915 = vmatpush1.msra.mxu0 0.0
        %1916 = vmatprep.subr.mxu0 0.0
        %1917 = vmatpush1.msra.mxu0 0.0
        %1918 = vmatprep.subr.mxu0 0.0
        %1919 = vmatpush1.msra.mxu0 0.0
        %1920 = vmatprep.subr.mxu0 0.0
        %1921 = vmatpush1.msra.mxu0 0.0
        %1922 = vmatprep.subr.mxu0 0.0
        %1923 = vmatpush1.msra.mxu0 0.0
        %1924 = vmatprep.mubr.f32.mxu0 0.0
        %1925 = vmatmul.mubr.f32.gmra.mrb[0].mxu0 %v1858
        %v1926 = vpop.f32.mrb[0].mxu0
        %v1927 = vadd.f32 0.0, %v1926
        %v1928 = vpop.f32.mrb[0].mxu0
        %1929 = vdwg.mxu0
        %1930 = vmatprep.subr.mxu0 0.0
        %1931 = vmatpush1.msra.mxu0 %v155
        %1932 = vmatprep.subr.mxu0 0.0
        %1933 = vmatpush1.msra.mxu0 %v156
        %1934 = vmatprep.subr.mxu0 0.0
        %1935 = vmatpush1.msra.mxu0 0.0
        %1936 = vmatprep.subr.mxu0 0.0
        %1937 = vmatpush1.msra.mxu0 0.0
        %1938 = vmatprep.subr.mxu0 0.0
        %1939 = vmatpush1.msra.mxu0 0.0
        %1940 = vmatprep.subr.mxu0 0.0
        %1941 = vmatpush1.msra.mxu0 0.0
        %1942 = vmatprep.subr.mxu0 0.0
        %1943 = vmatpush1.msra.mxu0 0.0
        %1944 = vmatprep.subr.mxu0 0.0
        %1945 = vmatpush1.msra.mxu0 0.0
        %1946 = vmatprep.subr.mxu0 0.0
        %1947 = vmatpush1.msra.mxu0 0.0
        %1948 = vmatprep.subr.mxu0 0.0
        %1949 = vmatpush1.msra.mxu0 0.0
        %1950 = vmatprep.subr.mxu0 0.0
        %1951 = vmatpush1.msra.mxu0 0.0
        %1952 = vmatprep.subr.mxu0 0.0
        %1953 = vmatpush1.msra.mxu0 0.0
        %1954 = vmatprep.subr.mxu0 0.0
        %1955 = vmatpush1.msra.mxu0 0.0
        %1956 = vmatprep.subr.mxu0 0.0
        %1957 = vmatpush1.msra.mxu0 0.0
        %1958 = vmatprep.subr.mxu0 0.0
        %1959 = vmatpush1.msra.mxu0 0.0
        %1960 = vmatprep.subr.mxu0 0.0
        %1961 = vmatpush1.msra.mxu0 0.0
        %1962 = vmatprep.subr.mxu0 0.0
        %1963 = vmatpush1.msra.mxu0 0.0
        %1964 = vmatprep.subr.mxu0 0.0
        %1965 = vmatpush1.msra.mxu0 0.0
        %1966 = vmatprep.subr.mxu0 0.0
        %1967 = vmatpush1.msra.mxu0 0.0
        %1968 = vmatprep.subr.mxu0 0.0
        %1969 = vmatpush1.msra.mxu0 0.0
        %1970 = vmatprep.subr.mxu0 0.0
        %1971 = vmatpush1.msra.mxu0 0.0
        %1972 = vmatprep.subr.mxu0 0.0
        %1973 = vmatpush1.msra.mxu0 0.0
        %1974 = vmatprep.subr.mxu0 0.0
        %1975 = vmatpush1.msra.mxu0 0.0
        %1976 = vmatprep.subr.mxu0 0.0
        %1977 = vmatpush1.msra.mxu0 0.0
        %1978 = vmatprep.subr.mxu0 0.0
        %1979 = vmatpush1.msra.mxu0 0.0
        %1980 = vmatprep.subr.mxu0 0.0
        %1981 = vmatpush1.msra.mxu0 0.0
        %1982 = vmatprep.subr.mxu0 0.0
        %1983 = vmatpush1.msra.mxu0 0.0
        %1984 = vmatprep.subr.mxu0 0.0
        %1985 = vmatpush1.msra.mxu0 0.0
        %1986 = vmatprep.subr.mxu0 0.0
        %1987 = vmatpush1.msra.mxu0 0.0
        %1988 = vmatprep.subr.mxu0 0.0
        %1989 = vmatpush1.msra.mxu0 0.0
        %1990 = vmatprep.subr.mxu0 0.0
        %1991 = vmatpush1.msra.mxu0 0.0
        %1992 = vmatprep.subr.mxu0 0.0
        %1993 = vmatpush1.msra.mxu0 0.0
        %1994 = vmatprep.mubr.f32.mxu0 0.0
        %1995 = vmatmul.mubr.f32.gmra.mrb[0].mxu0 %v1858
        %v1996 = vpop.f32.mrb[0].mxu0
        %v1997 = vadd.f32 0.0, %v1996
        %v1998 = vpop.f32.mrb[0].mxu0
        %1999 = vdwg.mxu0
        %v2000 = vmax.f32 %v1927, %v1997
        %2001 = vmatprep.subr.mxu0 0.0
        %2002 = vmatpush1.msra.mxu0 %v163
        %2003 = vmatprep.subr.mxu0 0.0
        %2004 = vmatpush1.msra.mxu0 %v164
        %2005 = vmatprep.subr.mxu0 0.0
        %2006 = vmatpush1.msra.mxu0 0.0
        %2007 = vmatprep.subr.mxu0 0.0
        %2008 = vmatpush1.msra.mxu0 0.0
        %2009 = vmatprep.subr.mxu0 0.0
        %2010 = vmatpush1.msra.mxu0 0.0
        %2011 = vmatprep.subr.mxu0 0.0
        %2012 = vmatpush1.msra.mxu0 0.0
        %2013 = vmatprep.subr.mxu0 0.0
        %2014 = vmatpush1.msra.mxu0 0.0
        %2015 = vmatprep.subr.mxu0 0.0
        %2016 = vmatpush1.msra.mxu0 0.0
        %2017 = vmatprep.subr.mxu0 0.0
        %2018 = vmatpush1.msra.mxu0 0.0
        %2019 = vmatprep.subr.mxu0 0.0
        %2020 = vmatpush1.msra.mxu0 0.0
        %2021 = vmatprep.subr.mxu0 0.0
        %2022 = vmatpush1.msra.mxu0 0.0
        %2023 = vmatprep.subr.mxu0 0.0
        %2024 = vmatpush1.msra.mxu0 0.0
        %2025 = vmatprep.subr.mxu0 0.0
        %2026 = vmatpush1.msra.mxu0 0.0
        %2027 = vmatprep.subr.mxu0 0.0
        %2028 = vmatpush1.msra.mxu0 0.0
        %2029 = vmatprep.subr.mxu0 0.0
        %2030 = vmatpush1.msra.mxu0 0.0
        %2031 = vmatprep.subr.mxu0 0.0
        %2032 = vmatpush1.msra.mxu0 0.0
        %2033 = vmatprep.subr.mxu0 0.0
        %2034 = vmatpush1.msra.mxu0 0.0
        %2035 = vmatprep.subr.mxu0 0.0
        %2036 = vmatpush1.msra.mxu0 0.0
        %2037 = vmatprep.subr.mxu0 0.0
        %2038 = vmatpush1.msra.mxu0 0.0
        %2039 = vmatprep.subr.mxu0 0.0
        %2040 = vmatpush1.msra.mxu0 0.0
        %2041 = vmatprep.subr.mxu0 0.0
        %2042 = vmatpush1.msra.mxu0 0.0
        %2043 = vmatprep.subr.mxu0 0.0
        %2044 = vmatpush1.msra.mxu0 0.0
        %2045 = vmatprep.subr.mxu0 0.0
        %2046 = vmatpush1.msra.mxu0 0.0
        %2047 = vmatprep.subr.mxu0 0.0
        %2048 = vmatpush1.msra.mxu0 0.0
        %2049 = vmatprep.subr.mxu0 0.0
        %2050 = vmatpush1.msra.mxu0 0.0
        %2051 = vmatprep.subr.mxu0 0.0
        %2052 = vmatpush1.msra.mxu0 0.0
        %2053 = vmatprep.subr.mxu0 0.0
        %2054 = vmatpush1.msra.mxu0 0.0
        %2055 = vmatprep.subr.mxu0 0.0
        %2056 = vmatpush1.msra.mxu0 0.0
        %2057 = vmatprep.subr.mxu0 0.0
        %2058 = vmatpush1.msra.mxu0 0.0
        %2059 = vmatprep.subr.mxu0 0.0
        %2060 = vmatpush1.msra.mxu0 0.0
        %2061 = vmatprep.subr.mxu0 0.0
        %2062 = vmatpush1.msra.mxu0 0.0
        %2063 = vmatprep.subr.mxu0 0.0
        %2064 = vmatpush1.msra.mxu0 0.0
        %2065 = vmatprep.mubr.f32.mxu0 0.0
        %2066 = vmatmul.mubr.f32.gmra.mrb[0].mxu0 %v1858
        %v2067 = vpop.f32.mrb[0].mxu0
        %v2068 = vadd.f32 0.0, %v2067
        %v2069 = vpop.f32.mrb[0].mxu0
        %2070 = vdwg.mxu0
        %v2071 = vmax.f32 %v2000, %v2068
        %v2074 = vunpack.c.l.s4 1966171168
        %v2075 = vunpack.c.0.s8 %v2074
        %v2076 = vlaneseq
        %v2077 = vshrl.u32 %v2076, 7
        %v2078 = vsub.s32 %v2075, %v2077
        %v2079 = vrot.slane %v2071, %v2078
        %v2080 = vcombine.high %v2079, %v2079
        %v2082 = vunpack.c.l.s4 1966171168
        %v2083 = vunpack.c.0.s8 %v2082
        %v2084 = vlaneseq
        %v2085 = vshrl.u32 %v2084, 7
        %v2086 = vsub.s32 %v2083, %v2085
        %v2087 = vrot.slane %v2079, %v2086
        %v2089 = vunpack.c.l.s4 1966171168
        %v2090 = vunpack.c.0.s8 %v2089
        %v2091 = vlaneseq
        %v2092 = vshrl.u32 %v2091, 7
        %v2093 = vsub.s32 %v2090, %v2092
        %v2094 = vrot.slane %v2080, %v2093
        %v2095 = vcombine.high %v2087, %v2087
        %v2096 = vcombine.high %v2094, %v2094
        %2101 = vst.msk [vmem:[%s135 + $0x6] sm:$0x1] %vm438, %v2087
        %2102 = vst.msk [vmem:[%s135 + $0xe] sm:$0x1] %vm438, %v2094
        %2103 = vst.msk [vmem:[%s135 + $0x16] sm:$0x1] %vm438, %v2095
        %2104 = vst.msk [vmem:[%s135 + $0x1e] sm:$0x1] %vm438, %v2096
        %v2105 = vld [vmem:[%s117 + $0xd] sm:$0x1]
        %v2106 = vld [vmem:[%s117 + $0x1d] sm:$0x1]
        %v2107 = vld [vmem:[%s117 + $0x2d] sm:$0x1]
        %v2108 = vld [vmem:[%s117 + $0x3d] sm:$0x1]
        %v2109 = vld [vmem:[%s117 + $0xe] sm:$0x1]
        %v2110 = vld [vmem:[%s117 + $0x1e] sm:$0x1]
        %v2111 = vld [vmem:[%s117 + $0x2e] sm:$0x1]
        %v2112 = vld [vmem:[%s117 + $0x3e] sm:$0x1]
        %v2113 = vmax.f32 %v2105, %v2109
        %v2114 = vmax.f32 %v2106, %v2110
        %v2115 = vmax.f32 %v2107, %v2111
        %v2116 = vmax.f32 %v2108, %v2112
        %v2117 = vld [vmem:[%s117 + $0xf] sm:$0x1]
        %v2118 = vld [vmem:[%s117 + $0x1f] sm:$0x1]
        %v2119 = vld [vmem:[%s117 + $0x2f] sm:$0x1]
        %v2120 = vld [vmem:[%s117 + $0x3f] sm:$0x1]
        %v2121 = vmax.f32 %v2113, %v2117
        %v2122 = vmax.f32 %v2114, %v2118
        %v2123 = vmax.f32 %v2115, %v2119
        %v2124 = vmax.f32 %v2116, %v2120
        %v2129 = vrot.slane %v2122, 7
        %v2130 = vsel %vm186, %v2129, %v2121
        %v2131 = vrot.slane %v2123, 6
        %v2132 = vsel %vm189, %v2131, %v2130
        %v2133 = vrot.slane %v2124, 5
        %v2134 = vsel %vm192, %v2133, %v2132
        %v2135 = vsel %vm194, %v2134, 0
        %2137 = vmatprep.subr.mxu0 0.0
        %2138 = vmatpush1.msra.mxu0 %v149
        %2139 = vmatprep.subr.mxu0 0.0
        %2140 = vmatpush1.msra.mxu0 %v150
        %2141 = vmatprep.subr.mxu0 0.0
        %2142 = vmatpush1.msra.mxu0 0.0
        %2143 = vmatprep.subr.mxu0 0.0
        %2144 = vmatpush1.msra.mxu0 0.0
        %2145 = vmatprep.subr.mxu0 0.0
        %2146 = vmatpush1.msra.mxu0 0.0
        %2147 = vmatprep.subr.mxu0 0.0
        %2148 = vmatpush1.msra.mxu0 0.0
        %2149 = vmatprep.subr.mxu0 0.0
        %2150 = vmatpush1.msra.mxu0 0.0
        %2151 = vmatprep.subr.mxu0 0.0
        %2152 = vmatpush1.msra.mxu0 0.0
        %2153 = vmatprep.subr.mxu0 0.0
        %2154 = vmatpush1.msra.mxu0 0.0
        %2155 = vmatprep.subr.mxu0 0.0
        %2156 = vmatpush1.msra.mxu0 0.0
        %2157 = vmatprep.subr.mxu0 0.0
        %2158 = vmatpush1.msra.mxu0 0.0
        %2159 = vmatprep.subr.mxu0 0.0
        %2160 = vmatpush1.msra.mxu0 0.0
        %2161 = vmatprep.subr.mxu0 0.0
        %2162 = vmatpush1.msra.mxu0 0.0
        %2163 = vmatprep.subr.mxu0 0.0
        %2164 = vmatpush1.msra.mxu0 0.0
        %2165 = vmatprep.subr.mxu0 0.0
        %2166 = vmatpush1.msra.mxu0 0.0
        %2167 = vmatprep.subr.mxu0 0.0
        %2168 = vmatpush1.msra.mxu0 0.0
        %2169 = vmatprep.subr.mxu0 0.0
        %2170 = vmatpush1.msra.mxu0 0.0
        %2171 = vmatprep.subr.mxu0 0.0
        %2172 = vmatpush1.msra.mxu0 0.0
        %2173 = vmatprep.subr.mxu0 0.0
        %2174 = vmatpush1.msra.mxu0 0.0
        %2175 = vmatprep.subr.mxu0 0.0
        %2176 = vmatpush1.msra.mxu0 0.0
        %2177 = vmatprep.subr.mxu0 0.0
        %2178 = vmatpush1.msra.mxu0 0.0
        %2179 = vmatprep.subr.mxu0 0.0
        %2180 = vmatpush1.msra.mxu0 0.0
        %2181 = vmatprep.subr.mxu0 0.0
        %2182 = vmatpush1.msra.mxu0 0.0
        %2183 = vmatprep.subr.mxu0 0.0
        %2184 = vmatpush1.msra.mxu0 0.0
        %2185 = vmatprep.subr.mxu0 0.0
        %2186 = vmatpush1.msra.mxu0 0.0
        %2187 = vmatprep.subr.mxu0 0.0
        %2188 = vmatpush1.msra.mxu0 0.0
        %2189 = vmatprep.subr.mxu0 0.0
        %2190 = vmatpush1.msra.mxu0 0.0
        %2191 = vmatprep.subr.mxu0 0.0
        %2192 = vmatpush1.msra.mxu0 0.0
        %2193 = vmatprep.subr.mxu0 0.0
        %2194 = vmatpush1.msra.mxu0 0.0
        %2195 = vmatprep.subr.mxu0 0.0
        %2196 = vmatpush1.msra.mxu0 0.0
        %2197 = vmatprep.subr.mxu0 0.0
        %2198 = vmatpush1.msra.mxu0 0.0
        %2199 = vmatprep.subr.mxu0 0.0
        %2200 = vmatpush1.msra.mxu0 0.0
        %2201 = vmatprep.mubr.f32.mxu0 0.0
        %2202 = vmatmul.mubr.f32.gmra.mrb[0].mxu0 %v2135
        %v2203 = vpop.f32.mrb[0].mxu0
        %v2204 = vadd.f32 0.0, %v2203
        %v2205 = vpop.f32.mrb[0].mxu0
        %2206 = vdwg.mxu0
        %2207 = vmatprep.subr.mxu0 0.0
        %2208 = vmatpush1.msra.mxu0 %v155
        %2209 = vmatprep.subr.mxu0 0.0
        %2210 = vmatpush1.msra.mxu0 %v156
        %2211 = vmatprep.subr.mxu0 0.0
        %2212 = vmatpush1.msra.mxu0 0.0
        %2213 = vmatprep.subr.mxu0 0.0
        %2214 = vmatpush1.msra.mxu0 0.0
        %2215 = vmatprep.subr.mxu0 0.0
        %2216 = vmatpush1.msra.mxu0 0.0
        %2217 = vmatprep.subr.mxu0 0.0
        %2218 = vmatpush1.msra.mxu0 0.0
        %2219 = vmatprep.subr.mxu0 0.0
        %2220 = vmatpush1.msra.mxu0 0.0
        %2221 = vmatprep.subr.mxu0 0.0
        %2222 = vmatpush1.msra.mxu0 0.0
        %2223 = vmatprep.subr.mxu0 0.0
        %2224 = vmatpush1.msra.mxu0 0.0
        %2225 = vmatprep.subr.mxu0 0.0
        %2226 = vmatpush1.msra.mxu0 0.0
        %2227 = vmatprep.subr.mxu0 0.0
        %2228 = vmatpush1.msra.mxu0 0.0
        %2229 = vmatprep.subr.mxu0 0.0
        %2230 = vmatpush1.msra.mxu0 0.0
        %2231 = vmatprep.subr.mxu0 0.0
        %2232 = vmatpush1.msra.mxu0 0.0
        %2233 = vmatprep.subr.mxu0 0.0
        %2234 = vmatpush1.msra.mxu0 0.0
        %2235 = vmatprep.subr.mxu0 0.0
        %2236 = vmatpush1.msra.mxu0 0.0
        %2237 = vmatprep.subr.mxu0 0.0
        %2238 = vmatpush1.msra.mxu0 0.0
        %2239 = vmatprep.subr.mxu0 0.0
        %2240 = vmatpush1.msra.mxu0 0.0
        %2241 = vmatprep.subr.mxu0 0.0
        %2242 = vmatpush1.msra.mxu0 0.0
        %2243 = vmatprep.subr.mxu0 0.0
        %2244 = vmatpush1.msra.mxu0 0.0
        %2245 = vmatprep.subr.mxu0 0.0
        %2246 = vmatpush1.msra.mxu0 0.0
        %2247 = vmatprep.subr.mxu0 0.0
        %2248 = vmatpush1.msra.mxu0 0.0
        %2249 = vmatprep.subr.mxu0 0.0
        %2250 = vmatpush1.msra.mxu0 0.0
        %2251 = vmatprep.subr.mxu0 0.0
        %2252 = vmatpush1.msra.mxu0 0.0
        %2253 = vmatprep.subr.mxu0 0.0
        %2254 = vmatpush1.msra.mxu0 0.0
        %2255 = vmatprep.subr.mxu0 0.0
        %2256 = vmatpush1.msra.mxu0 0.0
        %2257 = vmatprep.subr.mxu0 0.0
        %2258 = vmatpush1.msra.mxu0 0.0
        %2259 = vmatprep.subr.mxu0 0.0
        %2260 = vmatpush1.msra.mxu0 0.0
        %2261 = vmatprep.subr.mxu0 0.0
        %2262 = vmatpush1.msra.mxu0 0.0
        %2263 = vmatprep.subr.mxu0 0.0
        %2264 = vmatpush1.msra.mxu0 0.0
        %2265 = vmatprep.subr.mxu0 0.0
        %2266 = vmatpush1.msra.mxu0 0.0
        %2267 = vmatprep.subr.mxu0 0.0
        %2268 = vmatpush1.msra.mxu0 0.0
        %2269 = vmatprep.subr.mxu0 0.0
        %2270 = vmatpush1.msra.mxu0 0.0
        %2271 = vmatprep.mubr.f32.mxu0 0.0
        %2272 = vmatmul.mubr.f32.gmra.mrb[0].mxu0 %v2135
        %v2273 = vpop.f32.mrb[0].mxu0
        %v2274 = vadd.f32 0.0, %v2273
        %v2275 = vpop.f32.mrb[0].mxu0
        %2276 = vdwg.mxu0
        %v2277 = vmax.f32 %v2204, %v2274
        %2278 = vmatprep.subr.mxu0 0.0
        %2279 = vmatpush1.msra.mxu0 %v163
        %2280 = vmatprep.subr.mxu0 0.0
        %2281 = vmatpush1.msra.mxu0 %v164
        %2282 = vmatprep.subr.mxu0 0.0
        %2283 = vmatpush1.msra.mxu0 0.0
        %2284 = vmatprep.subr.mxu0 0.0
        %2285 = vmatpush1.msra.mxu0 0.0
        %2286 = vmatprep.subr.mxu0 0.0
        %2287 = vmatpush1.msra.mxu0 0.0
        %2288 = vmatprep.subr.mxu0 0.0
        %2289 = vmatpush1.msra.mxu0 0.0
        %2290 = vmatprep.subr.mxu0 0.0
        %2291 = vmatpush1.msra.mxu0 0.0
        %2292 = vmatprep.subr.mxu0 0.0
        %2293 = vmatpush1.msra.mxu0 0.0
        %2294 = vmatprep.subr.mxu0 0.0
        %2295 = vmatpush1.msra.mxu0 0.0
        %2296 = vmatprep.subr.mxu0 0.0
        %2297 = vmatpush1.msra.mxu0 0.0
        %2298 = vmatprep.subr.mxu0 0.0
        %2299 = vmatpush1.msra.mxu0 0.0
        %2300 = vmatprep.subr.mxu0 0.0
        %2301 = vmatpush1.msra.mxu0 0.0
        %2302 = vmatprep.subr.mxu0 0.0
        %2303 = vmatpush1.msra.mxu0 0.0
        %2304 = vmatprep.subr.mxu0 0.0
        %2305 = vmatpush1.msra.mxu0 0.0
        %2306 = vmatprep.subr.mxu0 0.0
        %2307 = vmatpush1.msra.mxu0 0.0
        %2308 = vmatprep.subr.mxu0 0.0
        %2309 = vmatpush1.msra.mxu0 0.0
        %2310 = vmatprep.subr.mxu0 0.0
        %2311 = vmatpush1.msra.mxu0 0.0
        %2312 = vmatprep.subr.mxu0 0.0
        %2313 = vmatpush1.msra.mxu0 0.0
        %2314 = vmatprep.subr.mxu0 0.0
        %2315 = vmatpush1.msra.mxu0 0.0
        %2316 = vmatprep.subr.mxu0 0.0
        %2317 = vmatpush1.msra.mxu0 0.0
        %2318 = vmatprep.subr.mxu0 0.0
        %2319 = vmatpush1.msra.mxu0 0.0
        %2320 = vmatprep.subr.mxu0 0.0
        %2321 = vmatpush1.msra.mxu0 0.0
        %2322 = vmatprep.subr.mxu0 0.0
        %2323 = vmatpush1.msra.mxu0 0.0
        %2324 = vmatprep.subr.mxu0 0.0
        %2325 = vmatpush1.msra.mxu0 0.0
        %2326 = vmatprep.subr.mxu0 0.0
        %2327 = vmatpush1.msra.mxu0 0.0
        %2328 = vmatprep.subr.mxu0 0.0
        %2329 = vmatpush1.msra.mxu0 0.0
        %2330 = vmatprep.subr.mxu0 0.0
        %2331 = vmatpush1.msra.mxu0 0.0
        %2332 = vmatprep.subr.mxu0 0.0
        %2333 = vmatpush1.msra.mxu0 0.0
        %2334 = vmatprep.subr.mxu0 0.0
        %2335 = vmatpush1.msra.mxu0 0.0
        %2336 = vmatprep.subr.mxu0 0.0
        %2337 = vmatpush1.msra.mxu0 0.0
        %2338 = vmatprep.subr.mxu0 0.0
        %2339 = vmatpush1.msra.mxu0 0.0
        %2340 = vmatprep.subr.mxu0 0.0
        %2341 = vmatpush1.msra.mxu0 0.0
        %2342 = vmatprep.mubr.f32.mxu0 0.0
        %2343 = vmatmul.mubr.f32.gmra.mrb[0].mxu0 %v2135
        %v2344 = vpop.f32.mrb[0].mxu0
        %v2345 = vadd.f32 0.0, %v2344
        %v2346 = vpop.f32.mrb[0].mxu0
        %2347 = vdwg.mxu0
        %v2348 = vmax.f32 %v2277, %v2345
        %v2351 = vunpack.c.l.s4 1966171168
        %v2352 = vunpack.c.0.s8 %v2351
        %v2353 = vlaneseq
        %v2354 = vshrl.u32 %v2353, 7
        %v2355 = vsub.s32 %v2352, %v2354
        %v2356 = vrot.slane %v2348, %v2355
        %v2357 = vcombine.high %v2356, %v2356
        %v2359 = vunpack.c.l.s4 1966171168
        %v2360 = vunpack.c.0.s8 %v2359
        %v2361 = vlaneseq
        %v2362 = vshrl.u32 %v2361, 7
        %v2363 = vsub.s32 %v2360, %v2362
        %v2364 = vrot.slane %v2356, %v2363
        %v2366 = vunpack.c.l.s4 1966171168
        %v2367 = vunpack.c.0.s8 %v2366
        %v2368 = vlaneseq
        %v2369 = vshrl.u32 %v2368, 7
        %v2370 = vsub.s32 %v2367, %v2369
        %v2371 = vrot.slane %v2357, %v2370
        %v2372 = vcombine.high %v2364, %v2364
        %v2373 = vcombine.high %v2371, %v2371
        %2378 = vst.msk [vmem:[%s135 + $0x7] sm:$0x1] %vm438, %v2364
        %2379 = vst.msk [vmem:[%s135 + $0xf] sm:$0x1] %vm438, %v2371
        %2380 = vst.msk [vmem:[%s135 + $0x17] sm:$0x1] %vm438, %v2372
        %2381 = vst.msk [vmem:[%s135 + $0x1f] sm:$0x1] %vm438, %v2373
        %s2382 = sand.u32 %s52, 1
        %s2383 = scalar_lea.sflag [#allocation4], %s2382
        %s2384 = sand.u32 %s52, 1
        %s2385 = smul.addr %s2384, 32
        %s2386 = scalar_lea.vmem [#allocation5], %s2385
        // Predicated region
        $region29: #{_maxpool2d.1} parent=23 // pred_check
          %p2387 = pneg %p62
        $region30: #{_maxpool2d.1} parent=23 // pred_check_branch
          %2389 = sbr.rel (%p2387) target = $region32
        $region31: #{_maxpool2d.1} parent=23 // pred_region
          %s2390 = smul.u32 4, %s18
          %s2392 = ssub.s32 512, 512
          %2393 = vsyncadd %s2383, %s2392
          %s2394 = smul.addr %s2390, 128
          %s2395 = scalar_lea.hbm %s1, %s2394
          %s2396 = sshll.u32 %s2386, 4
          %s2397 = int_to_ptr.vmem [resolvable:$true] %s2396
          %2402 = dma.vmem_to_hbm [thread:$0]  %s2397, 512, %s2395, %s2383, 128, 128, 8
        $region32: #{_maxpool2d.1} parent=23 // pred_fallthru
          _
      $region24: #{_maxpool2d.1} parent=5 // pred_fallthru
        _
      %p2403 = scmp.le.s32.totalorder 2, %s13
      // Predicated region
      $region33: #{_maxpool2d.1} parent=5 // pred_check
        %p2404 = pneg %p2403
      $region34: #{_maxpool2d.1} parent=5 // pred_check_branch
        %2406 = sbr.rel (%p2404) target = $region36
      $region35: #{_maxpool2d.1} parent=5 // pred_region
        %s2407 = ssub.s32 %s13, 2
        // Predicated region
        $region37: #{_maxpool2d.1} parent=35 // pred_check
          %p2408 = pneg %p68
        $region38: #{_maxpool2d.1} parent=35 // pred_check_branch
          %2410 = sbr.rel (%p2408) target = $region40
        $region39: #{_maxpool2d.1} parent=35 // pred_region
          %s2411 = sand.u32 %s53, 1
          %s2412 = scalar_lea.sflag [#allocation4], %s2411
          %s2413 = sand.u32 %s53, 1
          %s2414 = smul.addr %s2413, 32
          %s2415 = scalar_lea.vmem [#allocation5], %s2414
          %2416 = dma.done %s2412, 512
        $region40: #{_maxpool2d.1} parent=35 // pred_fallthru
          _
      $region36: #{_maxpool2d.1} parent=5 // pred_fallthru
        _
    $region6: #{_maxpool2d.1} parent=1 // loop_footer
      %s17 = sadd.s32 1, %s13
    $region7: #{_maxpool2d.1} parent=1 // loop_footer_branch
      %12 = sbr.rel target = $region3
    $region8: #{_maxpool2d.1} parent=1 // loop_exit
      _
    %2417 = vsyncpa [#allocation3], 1
    %s2418 = scalar_lea.sflag [#allocation3], 1
    %2419 = vsyncpa %s2418, 1
    %2420 = vsyncpa [#allocation4], 1
    %s2421 = scalar_lea.sflag [#allocation4], 1
    %2422 = vsyncpa %s2421, 1

</llo_original>
